<compile_context>
chip_gen: v7x
topology: tpu7x:2x2x1
jax: 0.10.0
libtpu: 0.0.40
codegen_flags: <defaults>
</compile_context>

<pallas_src>
import functools

import jax
import jax.numpy as jnp
from jax.experimental import pallas as pl
from jax.experimental.pallas import tpu as pltpu


def _round_up(x, m):
    return ((x + m - 1) // m) * m


def _weights_plus_one(lat_w, latent):
    """1 + lat_w @ latent.

    n_factors (F) is tiny (typically 4); an MXU contraction over F would leave >95%
    of the systolic array padded, so we unroll F broadcast-multiply-adds on the VPU.
    The "+1" folds the residual `agg*w + agg` into a single multiply `agg * (w+1)`.
    """
    F, D = latent.shape
    lat_w = lat_w.astype(jnp.float32)
    latent = latent.astype(jnp.float32)
    if F <= 16:
        w1 = 1.0 + lat_w[:, 0:1] * latent[0:1, :]       # no ones() fill
        for f in range(1, F):                           # static unroll, stays on VPU
            w1 = w1 + lat_w[:, f:f + 1] * latent[f:f + 1, :]
        return w1
    # Large-F fallback: a real contraction is worth an MXU push.
    return 1.0 + jnp.dot(lat_w, latent, preferred_element_type=jnp.float32)


# ----------------------------------------------------------------------------
# VMEM budgeting / tile selection
# ----------------------------------------------------------------------------
def _vmem_limit_and_budget():
    """(scoped vmem limit to request, planning budget for tiles), in bytes."""
    cap = None
    try:
        cap = getattr(pltpu.get_tpu_info(), "vmem_capacity_bytes", None)
    except Exception:
        cap = None
    if not cap:
        cap = 64 * 1024 * 1024          # conservative: v7x physical VMEM
    limit = int(cap) * 3 // 4           # 96 MiB on v5e/v6e, 48 MiB on v7x
    budget = limit * 7 // 8             # headroom for Mosaic internal scratch
    return limit, budget


def _choose_tiles(M, K, D, F, budget):
    """Pick (tm, tk) for the tiled path under a VMEM byte budget."""

    def vmem_use(tm, tk):
        return (2 * tm * tk * 2          # interact tile (bf16), double-buffered
                + 2 * tk * D * 4         # emb tile (f32), double-buffered
                + 2 * tm * F * 4         # lat_w tile
                + 2 * F * D * 4          # latent_emb
                + 2 * tm * D * 4         # out tile
                + 1 * tm * D * 4)        # f32 accumulator scratch

    # tk is the lane dim of the interact block: multiple of 128, or the full K.
    tk_opts = [t for t in (2048, 1024, 512, 256, 128) if t <= K]
    if K <= 4096:
        tk_opts = [K] + tk_opts          # prefer a single reduction step when it fits
    if not tk_opts:
        tk_opts = [K]                    # K < 128

    # tm is a sublane dim: multiple of 8, or the full M.
    if M <= 256:
        tm_opts = [M]
    else:
        # Even tile count (balanced across v7x's 2 TensorCores), tiles capped ~512.
        n_tiles = 2 * max(1, -(-M // 1024))
        tm_bal = _round_up(-(-M // n_tiles), 8)
        tm_opts = [tm_bal] + [t for t in (512, 256, 128, 64, 32, 16, 8) if t <= M]

    for tm in tm_opts:
        for tk in tk_opts:
            if vmem_use(tm, tk) <= budget:
                return tm, tk
    return tm_opts[-1], tk_opts[-1]


# ----------------------------------------------------------------------------
# Fused path: both sides in one launch, everything VMEM-resident (tiny M).
# ----------------------------------------------------------------------------
def _fused_agg_kernel(im_ref, imt_ref, dis_emb_ref, dr_emb_ref, latent_ref,
                      di_w_ref, dr_w_ref, dis_out_ref, drug_out_ref):
    latent = latent_ref[...]
    # disease side: agg = interact_mat @ dr_emb   (bf16 mask -> f32, MXU f32 acc)
    dis_agg = jnp.dot(im_ref[...].astype(jnp.float32), dr_emb_ref[...],
                      preferred_element_type=jnp.float32)
    dis_out_ref[...] = (dis_agg * _weights_plus_one(di_w_ref[...], latent)
                        ).astype(dis_out_ref.dtype)
    # drug side: agg = interact_mat_t @ dis_emb
    drug_agg = jnp.dot(imt_ref[...].astype(jnp.float32), dis_emb_ref[...],
                       preferred_element_type=jnp.float32)
    drug_out_ref[...] = (drug_agg * _weights_plus_one(dr_w_ref[...], latent)
                         ).astype(drug_out_ref.dtype)


def _aggregate_fused(interact_mat, interact_mat_t, dis_emb, dr_emb,
                     latent_emb, di_w, dr_w):
    n_dis, n_drugs = interact_mat.shape
    F, D = latent_emb.shape

    def full(shape):
        # Full-extent block: exempt from the (8,128) divisibility rule.
        return pl.BlockSpec(shape, lambda i: (0,) * len(shape))

    return pl.pallas_call(
        _fused_agg_kernel,
        out_shape=(jax.ShapeDtypeStruct((n_dis, D), jnp.float32),
                   jax.ShapeDtypeStruct((n_drugs, D), jnp.float32)),
        grid_spec=pl.GridSpec(
            grid=(1,),
            in_specs=[full((n_dis, n_drugs)),
                      full((n_drugs, n_dis)),
                      full((n_dis, D)),
                      full((n_drugs, D)),
                      full((F, D)),
                      full((n_dis, F)),
                      full((n_drugs, F))],
            out_specs=(full((n_dis, D)), full((n_drugs, D))),
        ),
    )(interact_mat, interact_mat_t, dis_emb, dr_emb, latent_emb, di_w, dr_w)


# ----------------------------------------------------------------------------
# Tiled path: one side per call, grid = (M tiles "parallel", K tiles "arbitrary").
# ----------------------------------------------------------------------------
def _tiled_agg_kernel(interact_ref, emb_ref, lat_w_ref, latent_ref,
                      out_ref, acc_ref, *, k_rem):
    k = pl.program_id(1)
    nk = pl.num_programs(1)

    @pl.when(k == 0)
    def _():
        acc_ref[...] = jnp.zeros_like(acc_ref)

    a = interact_ref[...].astype(jnp.float32)
    e = emb_ref[...].astype(jnp.float32)
    if k_rem:
        # K % tk != 0: zero the out-of-bounds tail of the last K tile on BOTH
        # operands so padded (undefined) data never reaches the accumulator.
        limit = jnp.where(k == nk - 1, k_rem, a.shape[1])
        col = jax.lax.broadcasted_iota(jnp.int32, a.shape, 1)
        a = jnp.where(col < limit, a, 0.0)
        row = jax.lax.broadcasted_iota(jnp.int32, e.shape, 0)
        e = jnp.where(row < limit, e, 0.0)

    acc_ref[...] += jnp.dot(a, e, preferred_element_type=jnp.float32)

    @pl.when(k == nk - 1)
    def _():
        w1 = _weights_plus_one(lat_w_ref[...], latent_ref[...])
        out_ref[...] = (acc_ref[...] * w1).astype(out_ref.dtype)


def _aggregate_tiled(interact, emb, lat_w, latent_emb):
    """out[M, D] = (interact @ emb) * (1 + lat_w @ latent_emb), M- and K-tiled."""
    M, K = interact.shape
    F, D = latent_emb.shape
    vmem_limit, budget = _vmem_limit_and_budget()
    tm, tk = _choose_tiles(M, K, D, F, budget)
    grid = (pl.cdiv(M, tm), pl.cdiv(K, tk))          # K (reduction) last
    kernel = functools.partial(_tiled_agg_kernel, k_rem=K % tk)

    return pl.pallas_call(
        kernel,
        out_shape=jax.ShapeDtypeStruct((M, D), jnp.float32),
        grid_spec=pltpu.PrefetchScalarGridSpec(
            num_scalar_prefetch=0,
            grid=grid,
            in_specs=[pl.BlockSpec((tm, tk), lambda i, k: (i, k)),   # interact tile
                      pl.BlockSpec((tk, D), lambda i, k: (k, 0)),    # emb K-slab
                      pl.BlockSpec((tm, F), lambda i, k: (i, 0)),    # latent-weight rows
                      pl.BlockSpec((F, D), lambda i, k: (0, 0))],    # latent_emb (tiny)
            out_specs=pl.BlockSpec((tm, D), lambda i, k: (i, 0)),
            scratch_shapes=[pltpu.VMEM((tm, D), jnp.float32)],       # f32 accumulator
        ),
        compiler_params=pltpu.CompilerParams(
            dimension_semantics=("parallel", "arbitrary"),
            vmem_limit_bytes=vmem_limit),
    )(interact, emb, lat_w, latent_emb)


class AggregatorPallas:
    """JAX/Pallas port of SEPN Aggregator (module holds no learned params)."""

    # Below this row count the problem is dispatch/latency bound -> single fused
    # launch. Above it, the pipelined tiled path overlaps DMA with compute.
    _FUSED_MAX_ROWS = 256

    def __init__(self, n_drugs, n_diseases, n_factors, cast_interact_bf16=True):
        self.n_drugs = n_drugs
        self.n_diseases = n_diseases
        self.n_factors = n_factors
        # interact_mat is a 0/1 interaction mask -> bf16 cast is exactly lossless
        # and halves HBM/VMEM traffic of the dominant operand.
        self.cast_interact_bf16 = cast_interact_bf16

    def __call__(self, dis_emb, dr_emb, latent_emb,
                 di_lantent_weight, dr_lantent_weight,
                 interact_mat, interact_mat_t):
        if self.cast_interact_bf16:
            interact_mat = interact_mat.astype(jnp.bfloat16)
            interact_mat_t = interact_mat_t.astype(jnp.bfloat16)
        n_dis, n_drugs = interact_mat.shape
        if max(n_dis, n_drugs) <= self._FUSED_MAX_ROWS:
            return _aggregate_fused(interact_mat, interact_mat_t,
                                    dis_emb, dr_emb, latent_emb,
                                    di_lantent_weight, dr_lantent_weight)
        dis_agg = _aggregate_tiled(interact_mat, dr_emb,
                                   di_lantent_weight, latent_emb)
        drug_agg = _aggregate_tiled(interact_mat_t, dis_emb,
                                    dr_lantent_weight, latent_emb)
        return dis_agg, drug_agg


def _reference(dis_emb, dr_emb, latent_emb, di_w, dr_w, im, im_t):
    dis_agg = im @ dr_emb
    w_di = (latent_emb[None, :, :] * di_w[:, :, None]).sum(axis=1)
    dis_agg = dis_agg * w_di + dis_agg
    drug_agg = im_t @ dis_emb
    w_dr = (latent_emb[None, :, :] * dr_w[:, :, None]).sum(axis=1)
    drug_agg = drug_agg * w_dr + drug_agg
    return dis_agg, drug_agg


if __name__ == "__main__":
    # Full-precision reference matmuls so the comparison is apples-to-apples.
    jax.config.update("jax_default_matmul_precision", "highest")

    def run_case(n_diseases, n_drugs, n_factors, dim, seed=0, tol=1e-3):
        key = jax.random.PRNGKey(seed)
        k = jax.random.split(key, 6)
        dis_emb = jax.random.normal(k[0], (n_diseases, dim), jnp.float32)
        dr_emb = jax.random.normal(k[1], (n_drugs, dim), jnp.float32)
        latent_emb = jax.random.normal(k[2], (n_factors, dim), jnp.float32)
        di_w = jax.random.normal(k[3], (n_diseases, n_factors), jnp.float32)
        dr_w = jax.random.normal(k[4], (n_drugs, n_factors), jnp.float32)
        interact_mat = (jax.random.uniform(k[5], (n_diseases, n_drugs)) > 0.5
                        ).astype(jnp.float32)
        interact_mat_t = interact_mat.T   # module contract: caller supplies transpose

        agg = AggregatorPallas(n_drugs, n_diseases, n_factors)
        dis_agg, drug_agg = agg(dis_emb, dr_emb, latent_emb, di_w, dr_w,
                                interact_mat, interact_mat_t)
        jax.block_until_ready((dis_agg, drug_agg))

        ref_dis, ref_drug = _reference(dis_emb, dr_emb, latent_emb, di_w, dr_w,
                                       interact_mat, interact_mat_t)
        assert dis_agg.shape == (n_diseases, dim)
        assert drug_agg.shape == (n_drugs, dim)
        assert jnp.allclose(dis_agg, ref_dis, atol=tol, rtol=tol)
        assert jnp.allclose(drug_agg, ref_drug, atol=tol, rtol=tol)

    # 1) module demo sizes -> single fused launch (grid=(1,), full-extent blocks)
    run_case(n_diseases=16, n_drugs=24, n_factors=4, dim=128, seed=0)
    # 2) medium sizes -> tiled path, balanced M tiles, single K step
    run_case(n_diseases=640, n_drugs=768, n_factors=4, dim=128, seed=1)
    # 3) larger / ragged sizes -> K reduction tiling + K-edge masking + M edge tiles
    run_case(n_diseases=300, n_drugs=5000, n_factors=4, dim=128, seed=2)

    print("KERNEL_OK")
</pallas_src>

<mosaic_0001>
module attributes {stable_mosaic.version = 11 : i64} {
  func.func @_fused_agg_kernel(%arg0: i32, %arg1: memref<16x24xbf16, #tpu.memory_space<vmem>>, %arg2: memref<24x16xbf16, #tpu.memory_space<vmem>>, %arg3: memref<16x128xf32, #tpu.memory_space<vmem>>, %arg4: memref<24x128xf32, #tpu.memory_space<vmem>>, %arg5: memref<4x128xf32, #tpu.memory_space<vmem>>, %arg6: memref<16x4xf32, #tpu.memory_space<vmem>>, %arg7: memref<24x4xf32, #tpu.memory_space<vmem>>, %arg8: memref<16x128xf32, #tpu.memory_space<vmem>>, %arg9: memref<24x128xf32, #tpu.memory_space<vmem>>) attributes {dimension_semantics = [#tpu.dimension_semantics<arbitrary>], iteration_bounds = array<i64: 1>, scalar_prefetch = 0 : i64, scratch_operands = 0 : i64, tpu.core_type = #tpu.core_type<tc>, window_params = [{pipeline_mode = #tpu.pipeline_mode<synchronous>, transform_indices = @transform_0, window_bounds = array<i64: 16, 24>}, {pipeline_mode = #tpu.pipeline_mode<synchronous>, transform_indices = @transform_1, window_bounds = array<i64: 24, 16>}, {pipeline_mode = #tpu.pipeline_mode<synchronous>, transform_indices = @transform_2, window_bounds = array<i64: 16, 128>}, {pipeline_mode = #tpu.pipeline_mode<synchronous>, transform_indices = @transform_3, window_bounds = array<i64: 24, 128>}, {pipeline_mode = #tpu.pipeline_mode<synchronous>, transform_indices = @transform_4, window_bounds = array<i64: 4, 128>}, {pipeline_mode = #tpu.pipeline_mode<synchronous>, transform_indices = @transform_5, window_bounds = array<i64: 16, 4>}, {pipeline_mode = #tpu.pipeline_mode<synchronous>, transform_indices = @transform_6, window_bounds = array<i64: 24, 4>}, {pipeline_mode = #tpu.pipeline_mode<synchronous>, transform_indices = @transform_7, window_bounds = array<i64: 16, 128>}, {pipeline_mode = #tpu.pipeline_mode<synchronous>, transform_indices = @transform_8, window_bounds = array<i64: 24, 128>}]} {
    %c0 = arith.constant 0 : index
    %c0_0 = arith.constant 0 : index
    %0 = vector.load %arg5[%c0, %c0_0] : memref<4x128xf32, #tpu.memory_space<vmem>>, vector<4x128xf32>
    %c0_1 = arith.constant 0 : index
    %c0_2 = arith.constant 0 : index
    %1 = vector.load %arg1[%c0_1, %c0_2] : memref<16x24xbf16, #tpu.memory_space<vmem>>, vector<16x24xbf16>
    %2 = arith.extf %1 : vector<16x24xbf16> to vector<16x24xf32>
    %c0_3 = arith.constant 0 : index
    %c0_4 = arith.constant 0 : index
    %3 = vector.load %arg4[%c0_3, %c0_4] : memref<24x128xf32, #tpu.memory_space<vmem>>, vector<24x128xf32>
    %cst = arith.constant dense<0.000000e+00> : vector<16x128xf32>
    %4 = tpu.matmul %2, %3, %cst {dimension_numbers = #tpu.dot_dimension_numbers<[1], [0], [0], [1], [0, 0, 1, 1], [], []>, precision = #tpu.contract_precision<fp32>} : vector<16x24xf32>, vector<24x128xf32>, vector<16x128xf32> -> vector<16x128xf32>
    %c0_5 = arith.constant 0 : index
    %c0_6 = arith.constant 0 : index
    %5 = vector.load %arg6[%c0_5, %c0_6] : memref<16x4xf32, #tpu.memory_space<vmem>>, vector<16x4xf32>
    %6 = vector.extract_strided_slice %5 {offsets = [0, 0], sizes = [16, 1], strides = [1, 1]} : vector<16x4xf32> to vector<16x1xf32>
    %7 = vector.extract_strided_slice %0 {offsets = [0, 0], sizes = [1, 128], strides = [1, 1]} : vector<4x128xf32> to vector<1x128xf32>
    %8 = vector.broadcast %6 : vector<16x1xf32> to vector<16x128xf32>
    %9 = vector.broadcast %7 : vector<1x128xf32> to vector<16x128xf32>
    %10 = arith.mulf %8, %9 : vector<16x128xf32>
    %cst_7 = arith.constant 1.000000e+00 : f32
    %11 = vector.broadcast %cst_7 : f32 to vector<16x128xf32>
    %12 = arith.addf %11, %10 : vector<16x128xf32>
    %13 = vector.extract_strided_slice %5 {offsets = [0, 1], sizes = [16, 1], strides = [1, 1]} : vector<16x4xf32> to vector<16x1xf32>
    %14 = vector.extract_strided_slice %0 {offsets = [1, 0], sizes = [1, 128], strides = [1, 1]} : vector<4x128xf32> to vector<1x128xf32>
    %15 = vector.broadcast %13 : vector<16x1xf32> to vector<16x128xf32>
    %16 = vector.broadcast %14 : vector<1x128xf32> to vector<16x128xf32>
    %17 = arith.mulf %15, %16 : vector<16x128xf32>
    %18 = arith.addf %12, %17 : vector<16x128xf32>
    %19 = vector.extract_strided_slice %5 {offsets = [0, 2], sizes = [16, 1], strides = [1, 1]} : vector<16x4xf32> to vector<16x1xf32>
    %20 = vector.extract_strided_slice %0 {offsets = [2, 0], sizes = [1, 128], strides = [1, 1]} : vector<4x128xf32> to vector<1x128xf32>
    %21 = vector.broadcast %19 : vector<16x1xf32> to vector<16x128xf32>
    %22 = vector.broadcast %20 : vector<1x128xf32> to vector<16x128xf32>
    %23 = arith.mulf %21, %22 : vector<16x128xf32>
    %24 = arith.addf %18, %23 : vector<16x128xf32>
    %25 = vector.extract_strided_slice %5 {offsets = [0, 3], sizes = [16, 1], strides = [1, 1]} : vector<16x4xf32> to vector<16x1xf32>
    %26 = vector.extract_strided_slice %0 {offsets = [3, 0], sizes = [1, 128], strides = [1, 1]} : vector<4x128xf32> to vector<1x128xf32>
    %27 = vector.broadcast %25 : vector<16x1xf32> to vector<16x128xf32>
    %28 = vector.broadcast %26 : vector<1x128xf32> to vector<16x128xf32>
    %29 = arith.mulf %27, %28 : vector<16x128xf32>
    %30 = arith.addf %24, %29 : vector<16x128xf32>
    %31 = arith.mulf %4, %30 : vector<16x128xf32>
    %c0_8 = arith.constant 0 : index
    %c0_9 = arith.constant 0 : index
    %32 = vector.load %arg8[%c0_8, %c0_9] : memref<16x128xf32, #tpu.memory_space<vmem>>, vector<16x128xf32>
    tpu.vector_store %arg8[%c0_8, %c0_9], %31 {strides = array<i32>} : memref<16x128xf32, #tpu.memory_space<vmem>>, vector<16x128xf32>,
    %c0_10 = arith.constant 0 : index
    %c0_11 = arith.constant 0 : index
    %33 = vector.load %arg2[%c0_10, %c0_11] : memref<24x16xbf16, #tpu.memory_space<vmem>>, vector<24x16xbf16>
    %34 = arith.extf %33 : vector<24x16xbf16> to vector<24x16xf32>
    %c0_12 = arith.constant 0 : index
    %c0_13 = arith.constant 0 : index
    %35 = vector.load %arg3[%c0_12, %c0_13] : memref<16x128xf32, #tpu.memory_space<vmem>>, vector<16x128xf32>
    %cst_14 = arith.constant dense<0.000000e+00> : vector<24x128xf32>
    %36 = tpu.matmul %34, %35, %cst_14 {dimension_numbers = #tpu.dot_dimension_numbers<[1], [0], [0], [1], [0, 0, 1, 1], [], []>, precision = #tpu.contract_precision<fp32>} : vector<24x16xf32>, vector<16x128xf32>, vector<24x128xf32> -> vector<24x128xf32>
    %c0_15 = arith.constant 0 : index
    %c0_16 = arith.constant 0 : index
    %37 = vector.load %arg7[%c0_15, %c0_16] : memref<24x4xf32, #tpu.memory_space<vmem>>, vector<24x4xf32>
    %38 = vector.extract_strided_slice %37 {offsets = [0, 0], sizes = [24, 1], strides = [1, 1]} : vector<24x4xf32> to vector<24x1xf32>
    %39 = vector.extract_strided_slice %0 {offsets = [0, 0], sizes = [1, 128], strides = [1, 1]} : vector<4x128xf32> to vector<1x128xf32>
    %40 = vector.broadcast %38 : vector<24x1xf32> to vector<24x128xf32>
    %41 = vector.broadcast %39 : vector<1x128xf32> to vector<24x128xf32>
    %42 = arith.mulf %40, %41 : vector<24x128xf32>
    %cst_17 = arith.constant 1.000000e+00 : f32
    %43 = vector.broadcast %cst_17 : f32 to vector<24x128xf32>
    %44 = arith.addf %43, %42 : vector<24x128xf32>
    %45 = vector.extract_strided_slice %37 {offsets = [0, 1], sizes = [24, 1], strides = [1, 1]} : vector<24x4xf32> to vector<24x1xf32>
    %46 = vector.extract_strided_slice %0 {offsets = [1, 0], sizes = [1, 128], strides = [1, 1]} : vector<4x128xf32> to vector<1x128xf32>
    %47 = vector.broadcast %45 : vector<24x1xf32> to vector<24x128xf32>
    %48 = vector.broadcast %46 : vector<1x128xf32> to vector<24x128xf32>
    %49 = arith.mulf %47, %48 : vector<24x128xf32>
    %50 = arith.addf %44, %49 : vector<24x128xf32>
    %51 = vector.extract_strided_slice %37 {offsets = [0, 2], sizes = [24, 1], strides = [1, 1]} : vector<24x4xf32> to vector<24x1xf32>
    %52 = vector.extract_strided_slice %0 {offsets = [2, 0], sizes = [1, 128], strides = [1, 1]} : vector<4x128xf32> to vector<1x128xf32>
    %53 = vector.broadcast %51 : vector<24x1xf32> to vector<24x128xf32>
    %54 = vector.broadcast %52 : vector<1x128xf32> to vector<24x128xf32>
    %55 = arith.mulf %53, %54 : vector<24x128xf32>
    %56 = arith.addf %50, %55 : vector<24x128xf32>
    %57 = vector.extract_strided_slice %37 {offsets = [0, 3], sizes = [24, 1], strides = [1, 1]} : vector<24x4xf32> to vector<24x1xf32>
    %58 = vector.extract_strided_slice %0 {offsets = [3, 0], sizes = [1, 128], strides = [1, 1]} : vector<4x128xf32> to vector<1x128xf32>
    %59 = vector.broadcast %57 : vector<24x1xf32> to vector<24x128xf32>
    %60 = vector.broadcast %58 : vector<1x128xf32> to vector<24x128xf32>
    %61 = arith.mulf %59, %60 : vector<24x128xf32>
    %62 = arith.addf %56, %61 : vector<24x128xf32>
    %63 = arith.mulf %36, %62 : vector<24x128xf32>
    %c0_18 = arith.constant 0 : index
    %c0_19 = arith.constant 0 : index
    %64 = vector.load %arg9[%c0_18, %c0_19] : memref<24x128xf32, #tpu.memory_space<vmem>>, vector<24x128xf32>
    tpu.vector_store %arg9[%c0_18, %c0_19], %63 {strides = array<i32>} : memref<24x128xf32, #tpu.memory_space<vmem>>, vector<24x128xf32>,
    return
  }
  func.func @transform_0(%arg0: i32) -> (i32, i32) {
    %c0_i32 = arith.constant 0 : i32
    %c0_i32_0 = arith.constant 0 : i32
    %c0_i32_1 = arith.constant 0 : i32
    return %c0_i32, %c0_i32_0 : i32, i32
  }
  func.func @transform_1(%arg0: i32) -> (i32, i32) {
    %c0_i32 = arith.constant 0 : i32
    %c0_i32_0 = arith.constant 0 : i32
    %c0_i32_1 = arith.constant 0 : i32
    return %c0_i32, %c0_i32_0 : i32, i32
  }
  func.func @transform_2(%arg0: i32) -> (i32, i32) {
    %c0_i32 = arith.constant 0 : i32
    %c0_i32_0 = arith.constant 0 : i32
    %c0_i32_1 = arith.constant 0 : i32
    return %c0_i32, %c0_i32_0 : i32, i32
  }
  func.func @transform_3(%arg0: i32) -> (i32, i32) {
    %c0_i32 = arith.constant 0 : i32
    %c0_i32_0 = arith.constant 0 : i32
    %c0_i32_1 = arith.constant 0 : i32
    return %c0_i32, %c0_i32_0 : i32, i32
  }
  func.func @transform_4(%arg0: i32) -> (i32, i32) {
    %c0_i32 = arith.constant 0 : i32
    %c0_i32_0 = arith.constant 0 : i32
    %c0_i32_1 = arith.constant 0 : i32
    return %c0_i32, %c0_i32_0 : i32, i32
  }
  func.func @transform_5(%arg0: i32) -> (i32, i32) {
    %c0_i32 = arith.constant 0 : i32
    %c0_i32_0 = arith.constant 0 : i32
    %c0_i32_1 = arith.constant 0 : i32
    return %c0_i32, %c0_i32_0 : i32, i32
  }
  func.func @transform_6(%arg0: i32) -> (i32, i32) {
    %c0_i32 = arith.constant 0 : i32
    %c0_i32_0 = arith.constant 0 : i32
    %c0_i32_1 = arith.constant 0 : i32
    return %c0_i32, %c0_i32_0 : i32, i32
  }
  func.func @transform_7(%arg0: i32) -> (i32, i32) {
    %c0_i32 = arith.constant 0 : i32
    %c0_i32_0 = arith.constant 0 : i32
    %c0_i32_1 = arith.constant 0 : i32
    return %c0_i32, %c0_i32_0 : i32, i32
  }
  func.func @transform_8(%arg0: i32) -> (i32, i32) {
    %c0_i32 = arith.constant 0 : i32
    %c0_i32_0 = arith.constant 0 : i32
    %c0_i32_1 = arith.constant 0 : i32
    return %c0_i32, %c0_i32_0 : i32, i32
  }
}

</mosaic_0001>

<llo_original>
// kernel: tpu_custom_call.1
$region0: #{tpu_custom_call.1}
  #allocation0 [shape = 'u32[]', space=smem, size = 0x4, offset = 0x4, fixed_abs, tag = 'smem constant byte address 0x4 - core index']
  #allocation1 [shape = 'u32[144,128]{1,0:T(1,128)}', space=vmem, size = 0x12000, scoped, tag = 'internal scratch']
  %s0 = inlined_call_operand.vmem [shape: bf16[16,24], index: 0, kind: input, shape index: {}]
  %s1 = inlined_call_operand.vmem [shape: bf16[24,16], index: 1, kind: input, shape index: {}]
  %s2 = inlined_call_operand.vmem [shape: f32[16,128], index: 2, kind: input, shape index: {}]
  %s3 = inlined_call_operand.vmem [shape: f32[24,128], index: 3, kind: input, shape index: {}]
  %s4 = inlined_call_operand.vmem [shape: f32[4,128], index: 4, kind: input, shape index: {}]
  %s5 = inlined_call_operand.vmem [shape: f32[16,4], index: 5, kind: input, shape index: {}]
  %s6 = inlined_call_operand.vmem [shape: f32[24,4], index: 6, kind: input, shape index: {}]
  %s7 = inlined_call_operand.hbm [shape: f32[16,128], index: 7, kind: output, shape index: {0}]
  %s8 = inlined_call_operand.hbm [shape: f32[24,128], index: 8, kind: output, shape index: {1}]
  %9 = xla_tuple %s7, %s8
  %s10 = sld [smem:[#allocation0]]
  $region46: #{tpu_custom_call.1} parent=0
    _
  %s12 = ssub.s32 1, %s10
  %s13 = scalar_select 0, %s12, %s10
  $region1: #{tpu_custom_call.1} parent=0
    #allocation2 [shape = 'u8[8192]{0}', space=vmem, size = 0x2000, scoped, tag = 'output window, operand 0, single buffered']
    #allocation3 [shape = 's32[1]{0}', space=sflag, size = 0x4, scoped, tag = 'scoped memory for tpu_custom_call.1']
    #allocation4 [shape = 'u8[12288]{0}', space=vmem, size = 0x3000, scoped, tag = 'output window, operand 1, single buffered']
    #allocation5 [shape = 's32[1]{0}', space=sflag, size = 0x4, scoped, tag = 'scoped memory for tpu_custom_call.1']
    %14 = vsyncpa [#allocation3], 0
    %15 = vsyncpa [#allocation5], 0
    // Predicated region
    $region2: #{tpu_custom_call.1} parent=1 // pred_check
      _
    $region3: #{tpu_custom_call.1} parent=1 // pred_check_branch
      %17 = sbr.rel (0) target = $region5
    $region4: #{tpu_custom_call.1} parent=1 // pred_region
      _
    $region5: #{tpu_custom_call.1} parent=1 // pred_fallthru
      _
    // Predicated region
    $region6: #{tpu_custom_call.1} parent=1 // pred_check
      _
    $region7: #{tpu_custom_call.1} parent=1 // pred_check_branch
      %19 = sbr.rel (0) target = $region9
    $region8: #{tpu_custom_call.1} parent=1 // pred_region
      _
    $region9: #{tpu_custom_call.1} parent=1 // pred_fallthru
      _
    // Predicated region
    $region10: #{tpu_custom_call.1} parent=1 // pred_check
      _
    $region11: #{tpu_custom_call.1} parent=1 // pred_check_branch
      %21 = sbr.rel (0) target = $region13
    $region12: #{tpu_custom_call.1} parent=1 // pred_region
      _
    $region13: #{tpu_custom_call.1} parent=1 // pred_fallthru
      _
    // Predicated region
    $region14: #{tpu_custom_call.1} parent=1 // pred_check
      _
    $region15: #{tpu_custom_call.1} parent=1 // pred_check_branch
      %23 = sbr.rel (0) target = $region17
    $region16: #{tpu_custom_call.1} parent=1 // pred_region
      _
    $region17: #{tpu_custom_call.1} parent=1 // pred_fallthru
      _
    // Predicated region
    $region18: #{tpu_custom_call.1} parent=1 // pred_check
      _
    $region19: #{tpu_custom_call.1} parent=1 // pred_check_branch
      %25 = sbr.rel (0) target = $region21
    $region20: #{tpu_custom_call.1} parent=1 // pred_region
      _
    $region21: #{tpu_custom_call.1} parent=1 // pred_fallthru
      _
    // Predicated region
    $region22: #{tpu_custom_call.1} parent=1 // pred_check
      _
    $region23: #{tpu_custom_call.1} parent=1 // pred_check_branch
      %27 = sbr.rel (0) target = $region25
    $region24: #{tpu_custom_call.1} parent=1 // pred_region
      _
    $region25: #{tpu_custom_call.1} parent=1 // pred_fallthru
      _
    // Predicated region
    $region26: #{tpu_custom_call.1} parent=1 // pred_check
      _
    $region27: #{tpu_custom_call.1} parent=1 // pred_check_branch
      %29 = sbr.rel (0) target = $region29
    $region28: #{tpu_custom_call.1} parent=1 // pred_region
      _
    $region29: #{tpu_custom_call.1} parent=1 // pred_fallthru
      _
    %v30 = vld [vmem:[%s4] sm:$0xf]
    %v31 = vld [vmem:[%s0] sm:$0xf]
    %v32 = vld [vmem:[%s0 + $0x4] sm:$0xf]
    %v33 = vunpack.c.l.bf16 %v31
    %v34 = vunpack.c.l.bf16 %v32
    %v35 = vld [vmem:[%s3] sm:$0xff]
    %v36 = vld [vmem:[%s3 + $0x8] sm:$0xff]
    %v37 = vld [vmem:[%s3 + $0x10] sm:$0xff]
    %vm38 = vcmask 195584
    %v40 = vsel %vm38, %v33, 0
    %v43 = vsel %vm38, %v34, 0
    %45 = vmatprep.subr.mxu0 0.0
    %v46 = vand.u32 %v35, 4294901760
    %47 = vmatpush1.msra.mxu0 %v46
    %48 = vmatprep.subr.mxu0 0.0
    %v49 = vand.u32 %v36, 4294901760
    %50 = vmatpush1.msra.mxu0 %v49
    %51 = vmatprep.subr.mxu0 0.0
    %v52 = vand.u32 %v37, 4294901760
    %53 = vmatpush1.msra.mxu0 %v52
    %54 = vmatprep.subr.mxu0 0.0
    %55 = vmatpush1.msra.mxu0 0.0
    %56 = vmatprep.subr.mxu0 0.0
    %57 = vmatpush1.msra.mxu0 0.0
    %58 = vmatprep.subr.mxu0 0.0
    %59 = vmatpush1.msra.mxu0 0.0
    %60 = vmatprep.subr.mxu0 0.0
    %61 = vmatpush1.msra.mxu0 0.0
    %62 = vmatprep.subr.mxu0 0.0
    %63 = vmatpush1.msra.mxu0 0.0
    %64 = vmatprep.subr.mxu0 0.0
    %65 = vmatpush1.msra.mxu0 0.0
    %66 = vmatprep.subr.mxu0 0.0
    %67 = vmatpush1.msra.mxu0 0.0
    %68 = vmatprep.subr.mxu0 0.0
    %69 = vmatpush1.msra.mxu0 0.0
    %70 = vmatprep.subr.mxu0 0.0
    %71 = vmatpush1.msra.mxu0 0.0
    %72 = vmatprep.subr.mxu0 0.0
    %73 = vmatpush1.msra.mxu0 0.0
    %74 = vmatprep.subr.mxu0 0.0
    %75 = vmatpush1.msra.mxu0 0.0
    %76 = vmatprep.subr.mxu0 0.0
    %77 = vmatpush1.msra.mxu0 0.0
    %78 = vmatprep.subr.mxu0 0.0
    %79 = vmatpush1.msra.mxu0 0.0
    %80 = vmatprep.subr.mxu0 0.0
    %81 = vmatpush1.msra.mxu0 0.0
    %82 = vmatprep.subr.mxu0 0.0
    %83 = vmatpush1.msra.mxu0 0.0
    %84 = vmatprep.subr.mxu0 0.0
    %85 = vmatpush1.msra.mxu0 0.0
    %86 = vmatprep.subr.mxu0 0.0
    %87 = vmatpush1.msra.mxu0 0.0
    %88 = vmatprep.subr.mxu0 0.0
    %89 = vmatpush1.msra.mxu0 0.0
    %90 = vmatprep.subr.mxu0 0.0
    %91 = vmatpush1.msra.mxu0 0.0
    %92 = vmatprep.subr.mxu0 0.0
    %93 = vmatpush1.msra.mxu0 0.0
    %94 = vmatprep.subr.mxu0 0.0
    %95 = vmatpush1.msra.mxu0 0.0
    %96 = vmatprep.subr.mxu0 0.0
    %97 = vmatpush1.msra.mxu0 0.0
    %98 = vmatprep.subr.mxu0 0.0
    %99 = vmatpush1.msra.mxu0 0.0
    %100 = vmatprep.subr.mxu0 0.0
    %101 = vmatpush1.msra.mxu0 0.0
    %102 = vmatprep.subr.mxu0 0.0
    %103 = vmatpush1.msra.mxu0 0.0
    %104 = vmatprep.subr.mxu0 0.0
    %105 = vmatpush1.msra.mxu0 0.0
    %106 = vmatprep.subr.mxu0 0.0
    %107 = vmatpush1.msra.mxu0 0.0
    %108 = vmatprep.subr.mxu0 0.0
    %109 = vmatpush1.msra.mxu0 0.0
    %110 = vmatprep.subr.mxu0 0.0
    %111 = vmatpush1.msra.mxu0 0.0
    %112 = vmatprep.mubr.f32.mxu0 0.0
    %v113 = vand.u32 %v40, 4294901760
    %v114 = vsub.f32 %v40, %v113
    %v115 = vand.u32 %v114, 4294901760
    %v116 = vsub.f32 %v114, %v115
    %v117 = vand.u32 %v116, 4294901760
    %118 = vmatmul.mubr.f32.gmra.mrb[0].mxu0 %v117
    %v119 = vpop.f32.mrb[0].mxu0
    %v120 = vadd.f32 0.0, %v119
    %v121 = vpop.f32.mrb[0].mxu0
    %122 = vmatprep.mubr.f32.mxu0 0.0
    %v123 = vand.u32 %v43, 4294901760
    %v124 = vsub.f32 %v43, %v123
    %v125 = vand.u32 %v124, 4294901760
    %v126 = vsub.f32 %v124, %v125
    %v127 = vand.u32 %v126, 4294901760
    %128 = vmatmul.mubr.f32.gmra.mrb[0].mxu0 %v127
    %v129 = vpop.f32.mrb[0].mxu0
    %v130 = vadd.f32 0.0, %v129
    %v131 = vpop.f32.mrb[0].mxu0
    %132 = vdwg.mxu0
    %133 = vmatprep.subr.mxu0 0.0
    %v134 = vand.u32 %v35, 4294901760
    %v135 = vsub.f32 %v35, %v134
    %v136 = vand.u32 %v135, 4294901760
    %v137 = vsub.f32 %v135, %v136
    %v138 = vand.u32 %v137, 4294901760
    %139 = vmatpush1.msra.mxu0 %v138
    %140 = vmatprep.subr.mxu0 0.0
    %v141 = vand.u32 %v36, 4294901760
    %v142 = vsub.f32 %v36, %v141
    %v143 = vand.u32 %v142, 4294901760
    %v144 = vsub.f32 %v142, %v143
    %v145 = vand.u32 %v144, 4294901760
    %146 = vmatpush1.msra.mxu0 %v145
    %147 = vmatprep.subr.mxu0 0.0
    %v148 = vand.u32 %v37, 4294901760
    %v149 = vsub.f32 %v37, %v148
    %v150 = vand.u32 %v149, 4294901760
    %v151 = vsub.f32 %v149, %v150
    %v152 = vand.u32 %v151, 4294901760
    %153 = vmatpush1.msra.mxu0 %v152
    %154 = vmatprep.subr.mxu0 0.0
    %155 = vmatpush1.msra.mxu0 0.0
    %156 = vmatprep.subr.mxu0 0.0
    %157 = vmatpush1.msra.mxu0 0.0
    %158 = vmatprep.subr.mxu0 0.0
    %159 = vmatpush1.msra.mxu0 0.0
    %160 = vmatprep.subr.mxu0 0.0
    %161 = vmatpush1.msra.mxu0 0.0
    %162 = vmatprep.subr.mxu0 0.0
    %163 = vmatpush1.msra.mxu0 0.0
    %164 = vmatprep.subr.mxu0 0.0
    %165 = vmatpush1.msra.mxu0 0.0
    %166 = vmatprep.subr.mxu0 0.0
    %167 = vmatpush1.msra.mxu0 0.0
    %168 = vmatprep.subr.mxu0 0.0
    %169 = vmatpush1.msra.mxu0 0.0
    %170 = vmatprep.subr.mxu0 0.0
    %171 = vmatpush1.msra.mxu0 0.0
    %172 = vmatprep.subr.mxu0 0.0
    %173 = vmatpush1.msra.mxu0 0.0
    %174 = vmatprep.subr.mxu0 0.0
    %175 = vmatpush1.msra.mxu0 0.0
    %176 = vmatprep.subr.mxu0 0.0
    %177 = vmatpush1.msra.mxu0 0.0
    %178 = vmatprep.subr.mxu0 0.0
    %179 = vmatpush1.msra.mxu0 0.0
    %180 = vmatprep.subr.mxu0 0.0
    %181 = vmatpush1.msra.mxu0 0.0
    %182 = vmatprep.subr.mxu0 0.0
    %183 = vmatpush1.msra.mxu0 0.0
    %184 = vmatprep.subr.mxu0 0.0
    %185 = vmatpush1.msra.mxu0 0.0
    %186 = vmatprep.subr.mxu0 0.0
    %187 = vmatpush1.msra.mxu0 0.0
    %188 = vmatprep.subr.mxu0 0.0
    %189 = vmatpush1.msra.mxu0 0.0
    %190 = vmatprep.subr.mxu0 0.0
    %191 = vmatpush1.msra.mxu0 0.0
    %192 = vmatprep.subr.mxu0 0.0
    %193 = vmatpush1.msra.mxu0 0.0
    %194 = vmatprep.subr.mxu0 0.0
    %195 = vmatpush1.msra.mxu0 0.0
    %196 = vmatprep.subr.mxu0 0.0
    %197 = vmatpush1.msra.mxu0 0.0
    %198 = vmatprep.subr.mxu0 0.0
    %199 = vmatpush1.msra.mxu0 0.0
    %200 = vmatprep.subr.mxu0 0.0
    %201 = vmatpush1.msra.mxu0 0.0
    %202 = vmatprep.subr.mxu0 0.0
    %203 = vmatpush1.msra.mxu0 0.0
    %204 = vmatprep.subr.mxu0 0.0
    %205 = vmatpush1.msra.mxu0 0.0
    %206 = vmatprep.subr.mxu0 0.0
    %207 = vmatpush1.msra.mxu0 0.0
    %208 = vmatprep.subr.mxu0 0.0
    %209 = vmatpush1.msra.mxu0 0.0
    %210 = vmatprep.subr.mxu0 0.0
    %211 = vmatpush1.msra.mxu0 0.0
    %212 = vmatprep.mubr.f32.mxu0 0.0
    %v213 = vand.u32 %v40, 4294901760
    %214 = vmatmul.mubr.f32.gmra.mrb[0].mxu0 %v213
    %v215 = vpop.f32.mrb[0].mxu0
    %v216 = vadd.f32 %v120, %v215
    %v217 = vpop.f32.mrb[0].mxu0
    %218 = vmatprep.mubr.f32.mxu0 0.0
    %v219 = vand.u32 %v43, 4294901760
    %220 = vmatmul.mubr.f32.gmra.mrb[0].mxu0 %v219
    %v221 = vpop.f32.mrb[0].mxu0
    %v222 = vadd.f32 %v130, %v221
    %v223 = vpop.f32.mrb[0].mxu0
    %224 = vdwg.mxu0
    %225 = vmatprep.subr.mxu0 0.0
    %v226 = vand.u32 %v35, 4294901760
    %v227 = vsub.f32 %v35, %v226
    %228 = vmatpush1.msra.mxu0 %v227
    %229 = vmatprep.subr.mxu0 0.0
    %v230 = vand.u32 %v36, 4294901760
    %v231 = vsub.f32 %v36, %v230
    %232 = vmatpush1.msra.mxu0 %v231
    %233 = vmatprep.subr.mxu0 0.0
    %v234 = vand.u32 %v37, 4294901760
    %v235 = vsub.f32 %v37, %v234
    %236 = vmatpush1.msra.mxu0 %v235
    %237 = vmatprep.subr.mxu0 0.0
    %238 = vmatpush1.msra.mxu0 0.0
    %239 = vmatprep.subr.mxu0 0.0
    %240 = vmatpush1.msra.mxu0 0.0
    %241 = vmatprep.subr.mxu0 0.0
    %242 = vmatpush1.msra.mxu0 0.0
    %243 = vmatprep.subr.mxu0 0.0
    %244 = vmatpush1.msra.mxu0 0.0
    %245 = vmatprep.subr.mxu0 0.0
    %246 = vmatpush1.msra.mxu0 0.0
    %247 = vmatprep.subr.mxu0 0.0
    %248 = vmatpush1.msra.mxu0 0.0
    %249 = vmatprep.subr.mxu0 0.0
    %250 = vmatpush1.msra.mxu0 0.0
    %251 = vmatprep.subr.mxu0 0.0
    %252 = vmatpush1.msra.mxu0 0.0
    %253 = vmatprep.subr.mxu0 0.0
    %254 = vmatpush1.msra.mxu0 0.0
    %255 = vmatprep.subr.mxu0 0.0
    %256 = vmatpush1.msra.mxu0 0.0
    %257 = vmatprep.subr.mxu0 0.0
    %258 = vmatpush1.msra.mxu0 0.0
    %259 = vmatprep.subr.mxu0 0.0
    %260 = vmatpush1.msra.mxu0 0.0
    %261 = vmatprep.subr.mxu0 0.0
    %262 = vmatpush1.msra.mxu0 0.0
    %263 = vmatprep.subr.mxu0 0.0
    %264 = vmatpush1.msra.mxu0 0.0
    %265 = vmatprep.subr.mxu0 0.0
    %266 = vmatpush1.msra.mxu0 0.0
    %267 = vmatprep.subr.mxu0 0.0
    %268 = vmatpush1.msra.mxu0 0.0
    %269 = vmatprep.subr.mxu0 0.0
    %270 = vmatpush1.msra.mxu0 0.0
    %271 = vmatprep.subr.mxu0 0.0
    %272 = vmatpush1.msra.mxu0 0.0
    %273 = vmatprep.subr.mxu0 0.0
    %274 = vmatpush1.msra.mxu0 0.0
    %275 = vmatprep.subr.mxu0 0.0
    %276 = vmatpush1.msra.mxu0 0.0
    %277 = vmatprep.subr.mxu0 0.0
    %278 = vmatpush1.msra.mxu0 0.0
    %279 = vmatprep.subr.mxu0 0.0
    %280 = vmatpush1.msra.mxu0 0.0
    %281 = vmatprep.subr.mxu0 0.0
    %282 = vmatpush1.msra.mxu0 0.0
    %283 = vmatprep.subr.mxu0 0.0
    %284 = vmatpush1.msra.mxu0 0.0
    %285 = vmatprep.subr.mxu0 0.0
    %286 = vmatpush1.msra.mxu0 0.0
    %287 = vmatprep.subr.mxu0 0.0
    %288 = vmatpush1.msra.mxu0 0.0
    %289 = vmatprep.subr.mxu0 0.0
    %290 = vmatpush1.msra.mxu0 0.0
    %291 = vmatprep.subr.mxu0 0.0
    %292 = vmatpush1.msra.mxu0 0.0
    %293 = vmatprep.subr.mxu0 0.0
    %294 = vmatpush1.msra.mxu0 0.0
    %295 = vmatprep.mubr.f32.mxu0 0.0
    %v296 = vand.u32 %v40, 4294901760
    %v297 = vsub.f32 %v40, %v296
    %298 = vmatmul.mubr.f32.gmra.mrb[0].mxu0 %v297
    %v299 = vpop.f32.mrb[0].mxu0
    %v300 = vadd.f32 %v216, %v299
    %v301 = vpop.f32.mrb[0].mxu0
    %302 = vmatprep.mubr.f32.mxu0 0.0
    %v303 = vand.u32 %v43, 4294901760
    %v304 = vsub.f32 %v43, %v303
    %305 = vmatmul.mubr.f32.gmra.mrb[0].mxu0 %v304
    %v306 = vpop.f32.mrb[0].mxu0
    %v307 = vadd.f32 %v222, %v306
    %v308 = vpop.f32.mrb[0].mxu0
    %309 = vdwg.mxu0
    %310 = vmatprep.subr.mxu0 0.0
    %v311 = vand.u32 %v35, 4294901760
    %312 = vmatpush1.msra.mxu0 %v311
    %313 = vmatprep.subr.mxu0 0.0
    %v314 = vand.u32 %v36, 4294901760
    %315 = vmatpush1.msra.mxu0 %v314
    %316 = vmatprep.subr.mxu0 0.0
    %v317 = vand.u32 %v37, 4294901760
    %318 = vmatpush1.msra.mxu0 %v317
    %319 = vmatprep.subr.mxu0 0.0
    %320 = vmatpush1.msra.mxu0 0.0
    %321 = vmatprep.subr.mxu0 0.0
    %322 = vmatpush1.msra.mxu0 0.0
    %323 = vmatprep.subr.mxu0 0.0
    %324 = vmatpush1.msra.mxu0 0.0
    %325 = vmatprep.subr.mxu0 0.0
    %326 = vmatpush1.msra.mxu0 0.0
    %327 = vmatprep.subr.mxu0 0.0
    %328 = vmatpush1.msra.mxu0 0.0
    %329 = vmatprep.subr.mxu0 0.0
    %330 = vmatpush1.msra.mxu0 0.0
    %331 = vmatprep.subr.mxu0 0.0
    %332 = vmatpush1.msra.mxu0 0.0
    %333 = vmatprep.subr.mxu0 0.0
    %334 = vmatpush1.msra.mxu0 0.0
    %335 = vmatprep.subr.mxu0 0.0
    %336 = vmatpush1.msra.mxu0 0.0
    %337 = vmatprep.subr.mxu0 0.0
    %338 = vmatpush1.msra.mxu0 0.0
    %339 = vmatprep.subr.mxu0 0.0
    %340 = vmatpush1.msra.mxu0 0.0
    %341 = vmatprep.subr.mxu0 0.0
    %342 = vmatpush1.msra.mxu0 0.0
    %343 = vmatprep.subr.mxu0 0.0
    %344 = vmatpush1.msra.mxu0 0.0
    %345 = vmatprep.subr.mxu0 0.0
    %346 = vmatpush1.msra.mxu0 0.0
    %347 = vmatprep.subr.mxu0 0.0
    %348 = vmatpush1.msra.mxu0 0.0
    %349 = vmatprep.subr.mxu0 0.0
    %350 = vmatpush1.msra.mxu0 0.0
    %351 = vmatprep.subr.mxu0 0.0
    %352 = vmatpush1.msra.mxu0 0.0
    %353 = vmatprep.subr.mxu0 0.0
    %354 = vmatpush1.msra.mxu0 0.0
    %355 = vmatprep.subr.mxu0 0.0
    %356 = vmatpush1.msra.mxu0 0.0
    %357 = vmatprep.subr.mxu0 0.0
    %358 = vmatpush1.msra.mxu0 0.0
    %359 = vmatprep.subr.mxu0 0.0
    %360 = vmatpush1.msra.mxu0 0.0
    %361 = vmatprep.subr.mxu0 0.0
    %362 = vmatpush1.msra.mxu0 0.0
    %363 = vmatprep.subr.mxu0 0.0
    %364 = vmatpush1.msra.mxu0 0.0
    %365 = vmatprep.subr.mxu0 0.0
    %366 = vmatpush1.msra.mxu0 0.0
    %367 = vmatprep.subr.mxu0 0.0
    %368 = vmatpush1.msra.mxu0 0.0
    %369 = vmatprep.subr.mxu0 0.0
    %370 = vmatpush1.msra.mxu0 0.0
    %371 = vmatprep.subr.mxu0 0.0
    %372 = vmatpush1.msra.mxu0 0.0
    %373 = vmatprep.subr.mxu0 0.0
    %374 = vmatpush1.msra.mxu0 0.0
    %375 = vmatprep.subr.mxu0 0.0
    %376 = vmatpush1.msra.mxu0 0.0
    %377 = vmatprep.mubr.f32.mxu0 0.0
    %v378 = vand.u32 %v40, 4294901760
    %v379 = vsub.f32 %v40, %v378
    %v380 = vand.u32 %v379, 4294901760
    %381 = vmatmul.mubr.f32.gmra.mrb[0].mxu0 %v380
    %v382 = vpop.f32.mrb[0].mxu0
    %v383 = vadd.f32 %v300, %v382
    %v384 = vpop.f32.mrb[0].mxu0
    %385 = vmatprep.mubr.f32.mxu0 0.0
    %v386 = vand.u32 %v43, 4294901760
    %v387 = vsub.f32 %v43, %v386
    %v388 = vand.u32 %v387, 4294901760
    %389 = vmatmul.mubr.f32.gmra.mrb[0].mxu0 %v388
    %v390 = vpop.f32.mrb[0].mxu0
    %v391 = vadd.f32 %v307, %v390
    %v392 = vpop.f32.mrb[0].mxu0
    %393 = vdwg.mxu0
    %394 = vmatprep.subr.mxu0 0.0
    %v395 = vand.u32 %v35, 4294901760
    %v396 = vsub.f32 %v35, %v395
    %v397 = vand.u32 %v396, 4294901760
    %398 = vmatpush1.msra.mxu0 %v397
    %399 = vmatprep.subr.mxu0 0.0
    %v400 = vand.u32 %v36, 4294901760
    %v401 = vsub.f32 %v36, %v400
    %v402 = vand.u32 %v401, 4294901760
    %403 = vmatpush1.msra.mxu0 %v402
    %404 = vmatprep.subr.mxu0 0.0
    %v405 = vand.u32 %v37, 4294901760
    %v406 = vsub.f32 %v37, %v405
    %v407 = vand.u32 %v406, 4294901760
    %408 = vmatpush1.msra.mxu0 %v407
    %409 = vmatprep.subr.mxu0 0.0
    %410 = vmatpush1.msra.mxu0 0.0
    %411 = vmatprep.subr.mxu0 0.0
    %412 = vmatpush1.msra.mxu0 0.0
    %413 = vmatprep.subr.mxu0 0.0
    %414 = vmatpush1.msra.mxu0 0.0
    %415 = vmatprep.subr.mxu0 0.0
    %416 = vmatpush1.msra.mxu0 0.0
    %417 = vmatprep.subr.mxu0 0.0
    %418 = vmatpush1.msra.mxu0 0.0
    %419 = vmatprep.subr.mxu0 0.0
    %420 = vmatpush1.msra.mxu0 0.0
    %421 = vmatprep.subr.mxu0 0.0
    %422 = vmatpush1.msra.mxu0 0.0
    %423 = vmatprep.subr.mxu0 0.0
    %424 = vmatpush1.msra.mxu0 0.0
    %425 = vmatprep.subr.mxu0 0.0
    %426 = vmatpush1.msra.mxu0 0.0
    %427 = vmatprep.subr.mxu0 0.0
    %428 = vmatpush1.msra.mxu0 0.0
    %429 = vmatprep.subr.mxu0 0.0
    %430 = vmatpush1.msra.mxu0 0.0
    %431 = vmatprep.subr.mxu0 0.0
    %432 = vmatpush1.msra.mxu0 0.0
    %433 = vmatprep.subr.mxu0 0.0
    %434 = vmatpush1.msra.mxu0 0.0
    %435 = vmatprep.subr.mxu0 0.0
    %436 = vmatpush1.msra.mxu0 0.0
    %437 = vmatprep.subr.mxu0 0.0
    %438 = vmatpush1.msra.mxu0 0.0
    %439 = vmatprep.subr.mxu0 0.0
    %440 = vmatpush1.msra.mxu0 0.0
    %441 = vmatprep.subr.mxu0 0.0
    %442 = vmatpush1.msra.mxu0 0.0
    %443 = vmatprep.subr.mxu0 0.0
    %444 = vmatpush1.msra.mxu0 0.0
    %445 = vmatprep.subr.mxu0 0.0
    %446 = vmatpush1.msra.mxu0 0.0
    %447 = vmatprep.subr.mxu0 0.0
    %448 = vmatpush1.msra.mxu0 0.0
    %449 = vmatprep.subr.mxu0 0.0
    %450 = vmatpush1.msra.mxu0 0.0
    %451 = vmatprep.subr.mxu0 0.0
    %452 = vmatpush1.msra.mxu0 0.0
    %453 = vmatprep.subr.mxu0 0.0
    %454 = vmatpush1.msra.mxu0 0.0
    %455 = vmatprep.subr.mxu0 0.0
    %456 = vmatpush1.msra.mxu0 0.0
    %457 = vmatprep.subr.mxu0 0.0
    %458 = vmatpush1.msra.mxu0 0.0
    %459 = vmatprep.subr.mxu0 0.0
    %460 = vmatpush1.msra.mxu0 0.0
    %461 = vmatprep.subr.mxu0 0.0
    %462 = vmatpush1.msra.mxu0 0.0
    %463 = vmatprep.subr.mxu0 0.0
    %464 = vmatpush1.msra.mxu0 0.0
    %465 = vmatprep.subr.mxu0 0.0
    %466 = vmatpush1.msra.mxu0 0.0
    %467 = vmatprep.mubr.f32.mxu0 0.0
    %v468 = vand.u32 %v40, 4294901760
    %469 = vmatmul.mubr.f32.gmra.mrb[0].mxu0 %v468
    %v470 = vpop.f32.mrb[0].mxu0
    %v471 = vadd.f32 %v383, %v470
    %v472 = vpop.f32.mrb[0].mxu0
    %473 = vmatprep.mubr.f32.mxu0 0.0
    %v474 = vand.u32 %v43, 4294901760
    %475 = vmatmul.mubr.f32.gmra.mrb[0].mxu0 %v474
    %v476 = vpop.f32.mrb[0].mxu0
    %v477 = vadd.f32 %v391, %v476
    %v478 = vpop.f32.mrb[0].mxu0
    %479 = vdwg.mxu0
    %480 = vmatprep.subr.mxu0 0.0
    %v481 = vand.u32 %v35, 4294901760
    %482 = vmatpush1.msra.mxu0 %v481
    %483 = vmatprep.subr.mxu0 0.0
    %v484 = vand.u32 %v36, 4294901760
    %485 = vmatpush1.msra.mxu0 %v484
    %486 = vmatprep.subr.mxu0 0.0
    %v487 = vand.u32 %v37, 4294901760
    %488 = vmatpush1.msra.mxu0 %v487
    %489 = vmatprep.subr.mxu0 0.0
    %490 = vmatpush1.msra.mxu0 0.0
    %491 = vmatprep.subr.mxu0 0.0
    %492 = vmatpush1.msra.mxu0 0.0
    %493 = vmatprep.subr.mxu0 0.0
    %494 = vmatpush1.msra.mxu0 0.0
    %495 = vmatprep.subr.mxu0 0.0
    %496 = vmatpush1.msra.mxu0 0.0
    %497 = vmatprep.subr.mxu0 0.0
    %498 = vmatpush1.msra.mxu0 0.0
    %499 = vmatprep.subr.mxu0 0.0
    %500 = vmatpush1.msra.mxu0 0.0
    %501 = vmatprep.subr.mxu0 0.0
    %502 = vmatpush1.msra.mxu0 0.0
    %503 = vmatprep.subr.mxu0 0.0
    %504 = vmatpush1.msra.mxu0 0.0
    %505 = vmatprep.subr.mxu0 0.0
    %506 = vmatpush1.msra.mxu0 0.0
    %507 = vmatprep.subr.mxu0 0.0
    %508 = vmatpush1.msra.mxu0 0.0
    %509 = vmatprep.subr.mxu0 0.0
    %510 = vmatpush1.msra.mxu0 0.0
    %511 = vmatprep.subr.mxu0 0.0
    %512 = vmatpush1.msra.mxu0 0.0
    %513 = vmatprep.subr.mxu0 0.0
    %514 = vmatpush1.msra.mxu0 0.0
    %515 = vmatprep.subr.mxu0 0.0
    %516 = vmatpush1.msra.mxu0 0.0
    %517 = vmatprep.subr.mxu0 0.0
    %518 = vmatpush1.msra.mxu0 0.0
    %519 = vmatprep.subr.mxu0 0.0
    %520 = vmatpush1.msra.mxu0 0.0
    %521 = vmatprep.subr.mxu0 0.0
    %522 = vmatpush1.msra.mxu0 0.0
    %523 = vmatprep.subr.mxu0 0.0
    %524 = vmatpush1.msra.mxu0 0.0
    %525 = vmatprep.subr.mxu0 0.0
    %526 = vmatpush1.msra.mxu0 0.0
    %527 = vmatprep.subr.mxu0 0.0
    %528 = vmatpush1.msra.mxu0 0.0
    %529 = vmatprep.subr.mxu0 0.0
    %530 = vmatpush1.msra.mxu0 0.0
    %531 = vmatprep.subr.mxu0 0.0
    %532 = vmatpush1.msra.mxu0 0.0
    %533 = vmatprep.subr.mxu0 0.0
    %534 = vmatpush1.msra.mxu0 0.0
    %535 = vmatprep.subr.mxu0 0.0
    %536 = vmatpush1.msra.mxu0 0.0
    %537 = vmatprep.subr.mxu0 0.0
    %538 = vmatpush1.msra.mxu0 0.0
    %539 = vmatprep.subr.mxu0 0.0
    %540 = vmatpush1.msra.mxu0 0.0
    %541 = vmatprep.subr.mxu0 0.0
    %542 = vmatpush1.msra.mxu0 0.0
    %543 = vmatprep.subr.mxu0 0.0
    %544 = vmatpush1.msra.mxu0 0.0
    %545 = vmatprep.subr.mxu0 0.0
    %546 = vmatpush1.msra.mxu0 0.0
    %547 = vmatprep.mubr.f32.mxu0 0.0
    %v548 = vand.u32 %v40, 4294901760
    %549 = vmatmul.mubr.f32.gmra.mrb[0].mxu0 %v548
    %v550 = vpop.f32.mrb[0].mxu0
    %v551 = vadd.f32 %v471, %v550
    %v552 = vpop.f32.mrb[0].mxu0
    %553 = vmatprep.mubr.f32.mxu0 0.0
    %v554 = vand.u32 %v43, 4294901760
    %555 = vmatmul.mubr.f32.gmra.mrb[0].mxu0 %v554
    %v556 = vpop.f32.mrb[0].mxu0
    %v557 = vadd.f32 %v477, %v556
    %v558 = vpop.f32.mrb[0].mxu0
    %559 = vdwg.mxu0
    %v560 = vld [vmem:[%s5] sm:$0xff]
    %v561 = vld [vmem:[%s5 + $0x8] sm:$0xff]
    %563 = vset.pattern.permute.xlu0 0
    %564 = vperm.xlu0 %563, %v560
    %v565 = vpop.permute.xlu0 %564
    %568 = vset.pattern.permute.xlu0 0
    %569 = vperm.xlu0 %568, %v561
    %v570 = vpop.permute.xlu0 %569
    %v572 = vlaneseq
    %v573 = vshrl.u32 %v572, 7
    %v574 = vsub.s32 0, %v573
    %v575 = vrot.slane %v30, %v574
    %v576 = vmul.f32 %v565, %v575
    %v577 = vmul.f32 %v570, %v575
    %v578 = vadd.f32 %v576, 1.0
    %v579 = vadd.f32 %v577, 1.0
    %580 = vset.pattern.permute.xlu0 1
    %581 = vperm.xlu0 %580, %v560
    %v582 = vpop.permute.xlu0 %581
    %584 = vset.pattern.permute.xlu0 1
    %585 = vperm.xlu0 %584, %v561
    %v586 = vpop.permute.xlu0 %585
    %v588 = vlaneseq
    %v589 = vshrl.u32 %v588, 7
    %v590 = vsub.s32 1, %v589
    %v591 = vrot.slane %v30, %v590
    %v592 = vmul.f32 %v582, %v591
    %v593 = vmul.f32 %v586, %v591
    %v594 = vadd.f32 %v578, %v592
    %v595 = vadd.f32 %v579, %v593
    %596 = vset.pattern.permute.xlu0 2
    %597 = vperm.xlu0 %596, %v560
    %v598 = vpop.permute.xlu0 %597
    %600 = vset.pattern.permute.xlu0 2
    %601 = vperm.xlu0 %600, %v561
    %v602 = vpop.permute.xlu0 %601
    %v604 = vlaneseq
    %v605 = vshrl.u32 %v604, 7
    %v606 = vsub.s32 2, %v605
    %v607 = vrot.slane %v30, %v606
    %v608 = vmul.f32 %v598, %v607
    %v609 = vmul.f32 %v602, %v607
    %v610 = vadd.f32 %v594, %v608
    %v611 = vadd.f32 %v595, %v609
    %612 = vset.pattern.permute.xlu0 3
    %613 = vperm.xlu0 %612, %v560
    %v614 = vpop.permute.xlu0 %613
    %616 = vset.pattern.permute.xlu0 3
    %617 = vperm.xlu0 %616, %v561
    %v618 = vpop.permute.xlu0 %617
    %v620 = vlaneseq
    %v621 = vshrl.u32 %v620, 7
    %v622 = vsub.s32 3, %v621
    %v623 = vrot.slane %v30, %v622
    %v624 = vmul.f32 %v614, %v623
    %v625 = vmul.f32 %v618, %v623
    %v626 = vadd.f32 %v610, %v624
    %v627 = vadd.f32 %v611, %v625
    %v628 = vmul.f32 %v551, %v626
    %v629 = vmul.f32 %v557, %v627
    %630 = vst [vmem:[#allocation2] sm:$0xff] %v628
    %631 = vst [vmem:[#allocation2 + $0x8] sm:$0xff] %v629
    %v632 = vld [vmem:[%s1] sm:$0xf]
    %v633 = vld [vmem:[%s1 + $0x4] sm:$0xf]
    %v634 = vld [vmem:[%s1 + $0x8] sm:$0xf]
    %v635 = vunpack.c.l.bf16 %v632
    %v636 = vunpack.c.l.bf16 %v633
    %v637 = vunpack.c.l.bf16 %v634
    %v638 = vld [vmem:[%s2] sm:$0xff]
    %v639 = vld [vmem:[%s2 + $0x8] sm:$0xff]
    %vm640 = vcmask 130048
    %v642 = vsel %vm640, %v635, 0
    %v645 = vsel %vm640, %v636, 0
    %v648 = vsel %vm640, %v637, 0
    %650 = vmatprep.subr.mxu0 0.0
    %v651 = vand.u32 %v638, 4294901760
    %652 = vmatpush1.msra.mxu0 %v651
    %653 = vmatprep.subr.mxu0 0.0
    %v654 = vand.u32 %v639, 4294901760
    %655 = vmatpush1.msra.mxu0 %v654
    %656 = vmatprep.subr.mxu0 0.0
    %657 = vmatpush1.msra.mxu0 0.0
    %658 = vmatprep.subr.mxu0 0.0
    %659 = vmatpush1.msra.mxu0 0.0
    %660 = vmatprep.subr.mxu0 0.0
    %661 = vmatpush1.msra.mxu0 0.0
    %662 = vmatprep.subr.mxu0 0.0
    %663 = vmatpush1.msra.mxu0 0.0
    %664 = vmatprep.subr.mxu0 0.0
    %665 = vmatpush1.msra.mxu0 0.0
    %666 = vmatprep.subr.mxu0 0.0
    %667 = vmatpush1.msra.mxu0 0.0
    %668 = vmatprep.subr.mxu0 0.0
    %669 = vmatpush1.msra.mxu0 0.0
    %670 = vmatprep.subr.mxu0 0.0
    %671 = vmatpush1.msra.mxu0 0.0
    %672 = vmatprep.subr.mxu0 0.0
    %673 = vmatpush1.msra.mxu0 0.0
    %674 = vmatprep.subr.mxu0 0.0
    %675 = vmatpush1.msra.mxu0 0.0
    %676 = vmatprep.subr.mxu0 0.0
    %677 = vmatpush1.msra.mxu0 0.0
    %678 = vmatprep.subr.mxu0 0.0
    %679 = vmatpush1.msra.mxu0 0.0
    %680 = vmatprep.subr.mxu0 0.0
    %681 = vmatpush1.msra.mxu0 0.0
    %682 = vmatprep.subr.mxu0 0.0
    %683 = vmatpush1.msra.mxu0 0.0
    %684 = vmatprep.subr.mxu0 0.0
    %685 = vmatpush1.msra.mxu0 0.0
    %686 = vmatprep.subr.mxu0 0.0
    %687 = vmatpush1.msra.mxu0 0.0
    %688 = vmatprep.subr.mxu0 0.0
    %689 = vmatpush1.msra.mxu0 0.0
    %690 = vmatprep.subr.mxu0 0.0
    %691 = vmatpush1.msra.mxu0 0.0
    %692 = vmatprep.subr.mxu0 0.0
    %693 = vmatpush1.msra.mxu0 0.0
    %694 = vmatprep.subr.mxu0 0.0
    %695 = vmatpush1.msra.mxu0 0.0
    %696 = vmatprep.subr.mxu0 0.0
    %697 = vmatpush1.msra.mxu0 0.0
    %698 = vmatprep.subr.mxu0 0.0
    %699 = vmatpush1.msra.mxu0 0.0
    %700 = vmatprep.subr.mxu0 0.0
    %701 = vmatpush1.msra.mxu0 0.0
    %702 = vmatprep.subr.mxu0 0.0
    %703 = vmatpush1.msra.mxu0 0.0
    %704 = vmatprep.subr.mxu0 0.0
    %705 = vmatpush1.msra.mxu0 0.0
    %706 = vmatprep.subr.mxu0 0.0
    %707 = vmatpush1.msra.mxu0 0.0
    %708 = vmatprep.subr.mxu0 0.0
    %709 = vmatpush1.msra.mxu0 0.0
    %710 = vmatprep.subr.mxu0 0.0
    %711 = vmatpush1.msra.mxu0 0.0
    %712 = vmatprep.subr.mxu0 0.0
    %713 = vmatpush1.msra.mxu0 0.0
    %714 = vmatprep.subr.mxu0 0.0
    %715 = vmatpush1.msra.mxu0 0.0
    %716 = vmatprep.mubr.f32.mxu0 0.0
    %v717 = vand.u32 %v642, 4294901760
    %v718 = vsub.f32 %v642, %v717
    %v719 = vand.u32 %v718, 4294901760
    %v720 = vsub.f32 %v718, %v719
    %v721 = vand.u32 %v720, 4294901760
    %722 = vmatmul.mubr.f32.gmra.mrb[0].mxu0 %v721
    %v723 = vpop.f32.mrb[0].mxu0
    %v724 = vadd.f32 0.0, %v723
    %v725 = vpop.f32.mrb[0].mxu0
    %726 = vmatprep.mubr.f32.mxu0 0.0
    %v727 = vand.u32 %v645, 4294901760
    %v728 = vsub.f32 %v645, %v727
    %v729 = vand.u32 %v728, 4294901760
    %v730 = vsub.f32 %v728, %v729
    %v731 = vand.u32 %v730, 4294901760
    %732 = vmatmul.mubr.f32.gmra.mrb[0].mxu0 %v731
    %v733 = vpop.f32.mrb[0].mxu0
    %v734 = vadd.f32 0.0, %v733
    %v735 = vpop.f32.mrb[0].mxu0
    %736 = vmatprep.mubr.f32.mxu0 0.0
    %v737 = vand.u32 %v648, 4294901760
    %v738 = vsub.f32 %v648, %v737
    %v739 = vand.u32 %v738, 4294901760
    %v740 = vsub.f32 %v738, %v739
    %v741 = vand.u32 %v740, 4294901760
    %742 = vmatmul.mubr.f32.gmra.mrb[0].mxu0 %v741
    %v743 = vpop.f32.mrb[0].mxu0
    %v744 = vadd.f32 0.0, %v743
    %v745 = vpop.f32.mrb[0].mxu0
    %746 = vdwg.mxu0
    %747 = vmatprep.subr.mxu0 0.0
    %v748 = vand.u32 %v638, 4294901760
    %v749 = vsub.f32 %v638, %v748
    %v750 = vand.u32 %v749, 4294901760
    %v751 = vsub.f32 %v749, %v750
    %v752 = vand.u32 %v751, 4294901760
    %753 = vmatpush1.msra.mxu0 %v752
    %754 = vmatprep.subr.mxu0 0.0
    %v755 = vand.u32 %v639, 4294901760
    %v756 = vsub.f32 %v639, %v755
    %v757 = vand.u32 %v756, 4294901760
    %v758 = vsub.f32 %v756, %v757
    %v759 = vand.u32 %v758, 4294901760
    %760 = vmatpush1.msra.mxu0 %v759
    %761 = vmatprep.subr.mxu0 0.0
    %762 = vmatpush1.msra.mxu0 0.0
    %763 = vmatprep.subr.mxu0 0.0
    %764 = vmatpush1.msra.mxu0 0.0
    %765 = vmatprep.subr.mxu0 0.0
    %766 = vmatpush1.msra.mxu0 0.0
    %767 = vmatprep.subr.mxu0 0.0
    %768 = vmatpush1.msra.mxu0 0.0
    %769 = vmatprep.subr.mxu0 0.0
    %770 = vmatpush1.msra.mxu0 0.0
    %771 = vmatprep.subr.mxu0 0.0
    %772 = vmatpush1.msra.mxu0 0.0
    %773 = vmatprep.subr.mxu0 0.0
    %774 = vmatpush1.msra.mxu0 0.0
    %775 = vmatprep.subr.mxu0 0.0
    %776 = vmatpush1.msra.mxu0 0.0
    %777 = vmatprep.subr.mxu0 0.0
    %778 = vmatpush1.msra.mxu0 0.0
    %779 = vmatprep.subr.mxu0 0.0
    %780 = vmatpush1.msra.mxu0 0.0
    %781 = vmatprep.subr.mxu0 0.0
    %782 = vmatpush1.msra.mxu0 0.0
    %783 = vmatprep.subr.mxu0 0.0
    %784 = vmatpush1.msra.mxu0 0.0
    %785 = vmatprep.subr.mxu0 0.0
    %786 = vmatpush1.msra.mxu0 0.0
    %787 = vmatprep.subr.mxu0 0.0
    %788 = vmatpush1.msra.mxu0 0.0
    %789 = vmatprep.subr.mxu0 0.0
    %790 = vmatpush1.msra.mxu0 0.0
    %791 = vmatprep.subr.mxu0 0.0
    %792 = vmatpush1.msra.mxu0 0.0
    %793 = vmatprep.subr.mxu0 0.0
    %794 = vmatpush1.msra.mxu0 0.0
    %795 = vmatprep.subr.mxu0 0.0
    %796 = vmatpush1.msra.mxu0 0.0
    %797 = vmatprep.subr.mxu0 0.0
    %798 = vmatpush1.msra.mxu0 0.0
    %799 = vmatprep.subr.mxu0 0.0
    %800 = vmatpush1.msra.mxu0 0.0
    %801 = vmatprep.subr.mxu0 0.0
    %802 = vmatpush1.msra.mxu0 0.0
    %803 = vmatprep.subr.mxu0 0.0
    %804 = vmatpush1.msra.mxu0 0.0
    %805 = vmatprep.subr.mxu0 0.0
    %806 = vmatpush1.msra.mxu0 0.0
    %807 = vmatprep.subr.mxu0 0.0
    %808 = vmatpush1.msra.mxu0 0.0
    %809 = vmatprep.subr.mxu0 0.0
    %810 = vmatpush1.msra.mxu0 0.0
    %811 = vmatprep.subr.mxu0 0.0
    %812 = vmatpush1.msra.mxu0 0.0
    %813 = vmatprep.subr.mxu0 0.0
    %814 = vmatpush1.msra.mxu0 0.0
    %815 = vmatprep.subr.mxu0 0.0
    %816 = vmatpush1.msra.mxu0 0.0
    %817 = vmatprep.subr.mxu0 0.0
    %818 = vmatpush1.msra.mxu0 0.0
    %819 = vmatprep.subr.mxu0 0.0
    %820 = vmatpush1.msra.mxu0 0.0
    %821 = vmatprep.mubr.f32.mxu0 0.0
    %v822 = vand.u32 %v642, 4294901760
    %823 = vmatmul.mubr.f32.gmra.mrb[0].mxu0 %v822
    %v824 = vpop.f32.mrb[0].mxu0
    %v825 = vadd.f32 %v724, %v824
    %v826 = vpop.f32.mrb[0].mxu0
    %827 = vmatprep.mubr.f32.mxu0 0.0
    %v828 = vand.u32 %v645, 4294901760
    %829 = vmatmul.mubr.f32.gmra.mrb[0].mxu0 %v828
    %v830 = vpop.f32.mrb[0].mxu0
    %v831 = vadd.f32 %v734, %v830
    %v832 = vpop.f32.mrb[0].mxu0
    %833 = vmatprep.mubr.f32.mxu0 0.0
    %v834 = vand.u32 %v648, 4294901760
    %835 = vmatmul.mubr.f32.gmra.mrb[0].mxu0 %v834
    %v836 = vpop.f32.mrb[0].mxu0
    %v837 = vadd.f32 %v744, %v836
    %v838 = vpop.f32.mrb[0].mxu0
    %839 = vdwg.mxu0
    %840 = vmatprep.subr.mxu0 0.0
    %v841 = vand.u32 %v638, 4294901760
    %v842 = vsub.f32 %v638, %v841
    %843 = vmatpush1.msra.mxu0 %v842
    %844 = vmatprep.subr.mxu0 0.0
    %v845 = vand.u32 %v639, 4294901760
    %v846 = vsub.f32 %v639, %v845
    %847 = vmatpush1.msra.mxu0 %v846
    %848 = vmatprep.subr.mxu0 0.0
    %849 = vmatpush1.msra.mxu0 0.0
    %850 = vmatprep.subr.mxu0 0.0
    %851 = vmatpush1.msra.mxu0 0.0
    %852 = vmatprep.subr.mxu0 0.0
    %853 = vmatpush1.msra.mxu0 0.0
    %854 = vmatprep.subr.mxu0 0.0
    %855 = vmatpush1.msra.mxu0 0.0
    %856 = vmatprep.subr.mxu0 0.0
    %857 = vmatpush1.msra.mxu0 0.0
    %858 = vmatprep.subr.mxu0 0.0
    %859 = vmatpush1.msra.mxu0 0.0
    %860 = vmatprep.subr.mxu0 0.0
    %861 = vmatpush1.msra.mxu0 0.0
    %862 = vmatprep.subr.mxu0 0.0
    %863 = vmatpush1.msra.mxu0 0.0
    %864 = vmatprep.subr.mxu0 0.0
    %865 = vmatpush1.msra.mxu0 0.0
    %866 = vmatprep.subr.mxu0 0.0
    %867 = vmatpush1.msra.mxu0 0.0
    %868 = vmatprep.subr.mxu0 0.0
    %869 = vmatpush1.msra.mxu0 0.0
    %870 = vmatprep.subr.mxu0 0.0
    %871 = vmatpush1.msra.mxu0 0.0
    %872 = vmatprep.subr.mxu0 0.0
    %873 = vmatpush1.msra.mxu0 0.0
    %874 = vmatprep.subr.mxu0 0.0
    %875 = vmatpush1.msra.mxu0 0.0
    %876 = vmatprep.subr.mxu0 0.0
    %877 = vmatpush1.msra.mxu0 0.0
    %878 = vmatprep.subr.mxu0 0.0
    %879 = vmatpush1.msra.mxu0 0.0
    %880 = vmatprep.subr.mxu0 0.0
    %881 = vmatpush1.msra.mxu0 0.0
    %882 = vmatprep.subr.mxu0 0.0
    %883 = vmatpush1.msra.mxu0 0.0
    %884 = vmatprep.subr.mxu0 0.0
    %885 = vmatpush1.msra.mxu0 0.0
    %886 = vmatprep.subr.mxu0 0.0
    %887 = vmatpush1.msra.mxu0 0.0
    %888 = vmatprep.subr.mxu0 0.0
    %889 = vmatpush1.msra.mxu0 0.0
    %890 = vmatprep.subr.mxu0 0.0
    %891 = vmatpush1.msra.mxu0 0.0
    %892 = vmatprep.subr.mxu0 0.0
    %893 = vmatpush1.msra.mxu0 0.0
    %894 = vmatprep.subr.mxu0 0.0
    %895 = vmatpush1.msra.mxu0 0.0
    %896 = vmatprep.subr.mxu0 0.0
    %897 = vmatpush1.msra.mxu0 0.0
    %898 = vmatprep.subr.mxu0 0.0
    %899 = vmatpush1.msra.mxu0 0.0
    %900 = vmatprep.subr.mxu0 0.0
    %901 = vmatpush1.msra.mxu0 0.0
    %902 = vmatprep.subr.mxu0 0.0
    %903 = vmatpush1.msra.mxu0 0.0
    %904 = vmatprep.subr.mxu0 0.0
    %905 = vmatpush1.msra.mxu0 0.0
    %906 = vmatprep.subr.mxu0 0.0
    %907 = vmatpush1.msra.mxu0 0.0
    %908 = vmatprep.mubr.f32.mxu0 0.0
    %v909 = vand.u32 %v642, 4294901760
    %v910 = vsub.f32 %v642, %v909
    %911 = vmatmul.mubr.f32.gmra.mrb[0].mxu0 %v910
    %v912 = vpop.f32.mrb[0].mxu0
    %v913 = vadd.f32 %v825, %v912
    %v914 = vpop.f32.mrb[0].mxu0
    %915 = vmatprep.mubr.f32.mxu0 0.0
    %v916 = vand.u32 %v645, 4294901760
    %v917 = vsub.f32 %v645, %v916
    %918 = vmatmul.mubr.f32.gmra.mrb[0].mxu0 %v917
    %v919 = vpop.f32.mrb[0].mxu0
    %v920 = vadd.f32 %v831, %v919
    %v921 = vpop.f32.mrb[0].mxu0
    %922 = vmatprep.mubr.f32.mxu0 0.0
    %v923 = vand.u32 %v648, 4294901760
    %v924 = vsub.f32 %v648, %v923
    %925 = vmatmul.mubr.f32.gmra.mrb[0].mxu0 %v924
    %v926 = vpop.f32.mrb[0].mxu0
    %v927 = vadd.f32 %v837, %v926
    %v928 = vpop.f32.mrb[0].mxu0
    %929 = vdwg.mxu0
    %930 = vmatprep.subr.mxu0 0.0
    %v931 = vand.u32 %v638, 4294901760
    %932 = vmatpush1.msra.mxu0 %v931
    %933 = vmatprep.subr.mxu0 0.0
    %v934 = vand.u32 %v639, 4294901760
    %935 = vmatpush1.msra.mxu0 %v934
    %936 = vmatprep.subr.mxu0 0.0
    %937 = vmatpush1.msra.mxu0 0.0
    %938 = vmatprep.subr.mxu0 0.0
    %939 = vmatpush1.msra.mxu0 0.0
    %940 = vmatprep.subr.mxu0 0.0
    %941 = vmatpush1.msra.mxu0 0.0
    %942 = vmatprep.subr.mxu0 0.0
    %943 = vmatpush1.msra.mxu0 0.0
    %944 = vmatprep.subr.mxu0 0.0
    %945 = vmatpush1.msra.mxu0 0.0
    %946 = vmatprep.subr.mxu0 0.0
    %947 = vmatpush1.msra.mxu0 0.0
    %948 = vmatprep.subr.mxu0 0.0
    %949 = vmatpush1.msra.mxu0 0.0
    %950 = vmatprep.subr.mxu0 0.0
    %951 = vmatpush1.msra.mxu0 0.0
    %952 = vmatprep.subr.mxu0 0.0
    %953 = vmatpush1.msra.mxu0 0.0
    %954 = vmatprep.subr.mxu0 0.0
    %955 = vmatpush1.msra.mxu0 0.0
    %956 = vmatprep.subr.mxu0 0.0
    %957 = vmatpush1.msra.mxu0 0.0
    %958 = vmatprep.subr.mxu0 0.0
    %959 = vmatpush1.msra.mxu0 0.0
    %960 = vmatprep.subr.mxu0 0.0
    %961 = vmatpush1.msra.mxu0 0.0
    %962 = vmatprep.subr.mxu0 0.0
    %963 = vmatpush1.msra.mxu0 0.0
    %964 = vmatprep.subr.mxu0 0.0
    %965 = vmatpush1.msra.mxu0 0.0
    %966 = vmatprep.subr.mxu0 0.0
    %967 = vmatpush1.msra.mxu0 0.0
    %968 = vmatprep.subr.mxu0 0.0
    %969 = vmatpush1.msra.mxu0 0.0
    %970 = vmatprep.subr.mxu0 0.0
    %971 = vmatpush1.msra.mxu0 0.0
    %972 = vmatprep.subr.mxu0 0.0
    %973 = vmatpush1.msra.mxu0 0.0
    %974 = vmatprep.subr.mxu0 0.0
    %975 = vmatpush1.msra.mxu0 0.0
    %976 = vmatprep.subr.mxu0 0.0
    %977 = vmatpush1.msra.mxu0 0.0
    %978 = vmatprep.subr.mxu0 0.0
    %979 = vmatpush1.msra.mxu0 0.0
    %980 = vmatprep.subr.mxu0 0.0
    %981 = vmatpush1.msra.mxu0 0.0
    %982 = vmatprep.subr.mxu0 0.0
    %983 = vmatpush1.msra.mxu0 0.0
    %984 = vmatprep.subr.mxu0 0.0
    %985 = vmatpush1.msra.mxu0 0.0
    %986 = vmatprep.subr.mxu0 0.0
    %987 = vmatpush1.msra.mxu0 0.0
    %988 = vmatprep.subr.mxu0 0.0
    %989 = vmatpush1.msra.mxu0 0.0
    %990 = vmatprep.subr.mxu0 0.0
    %991 = vmatpush1.msra.mxu0 0.0
    %992 = vmatprep.subr.mxu0 0.0
    %993 = vmatpush1.msra.mxu0 0.0
    %994 = vmatprep.subr.mxu0 0.0
    %995 = vmatpush1.msra.mxu0 0.0
    %996 = vmatprep.mubr.f32.mxu0 0.0
    %v997 = vand.u32 %v642, 4294901760
    %v998 = vsub.f32 %v642, %v997
    %v999 = vand.u32 %v998, 4294901760
    %1000 = vmatmul.mubr.f32.gmra.mrb[0].mxu0 %v999
    %v1001 = vpop.f32.mrb[0].mxu0
    %v1002 = vadd.f32 %v913, %v1001
    %v1003 = vpop.f32.mrb[0].mxu0
    %1004 = vmatprep.mubr.f32.mxu0 0.0
    %v1005 = vand.u32 %v645, 4294901760
    %v1006 = vsub.f32 %v645, %v1005
    %v1007 = vand.u32 %v1006, 4294901760
    %1008 = vmatmul.mubr.f32.gmra.mrb[0].mxu0 %v1007
    %v1009 = vpop.f32.mrb[0].mxu0
    %v1010 = vadd.f32 %v920, %v1009
    %v1011 = vpop.f32.mrb[0].mxu0
    %1012 = vmatprep.mubr.f32.mxu0 0.0
    %v1013 = vand.u32 %v648, 4294901760
    %v1014 = vsub.f32 %v648, %v1013
    %v1015 = vand.u32 %v1014, 4294901760
    %1016 = vmatmul.mubr.f32.gmra.mrb[0].mxu0 %v1015
    %v1017 = vpop.f32.mrb[0].mxu0
    %v1018 = vadd.f32 %v927, %v1017
    %v1019 = vpop.f32.mrb[0].mxu0
    %1020 = vdwg.mxu0
    %1021 = vmatprep.subr.mxu0 0.0
    %v1022 = vand.u32 %v638, 4294901760
    %v1023 = vsub.f32 %v638, %v1022
    %v1024 = vand.u32 %v1023, 4294901760
    %1025 = vmatpush1.msra.mxu0 %v1024
    %1026 = vmatprep.subr.mxu0 0.0
    %v1027 = vand.u32 %v639, 4294901760
    %v1028 = vsub.f32 %v639, %v1027
    %v1029 = vand.u32 %v1028, 4294901760
    %1030 = vmatpush1.msra.mxu0 %v1029
    %1031 = vmatprep.subr.mxu0 0.0
    %1032 = vmatpush1.msra.mxu0 0.0
    %1033 = vmatprep.subr.mxu0 0.0
    %1034 = vmatpush1.msra.mxu0 0.0
    %1035 = vmatprep.subr.mxu0 0.0
    %1036 = vmatpush1.msra.mxu0 0.0
    %1037 = vmatprep.subr.mxu0 0.0
    %1038 = vmatpush1.msra.mxu0 0.0
    %1039 = vmatprep.subr.mxu0 0.0
    %1040 = vmatpush1.msra.mxu0 0.0
    %1041 = vmatprep.subr.mxu0 0.0
    %1042 = vmatpush1.msra.mxu0 0.0
    %1043 = vmatprep.subr.mxu0 0.0
    %1044 = vmatpush1.msra.mxu0 0.0
    %1045 = vmatprep.subr.mxu0 0.0
    %1046 = vmatpush1.msra.mxu0 0.0
    %1047 = vmatprep.subr.mxu0 0.0
    %1048 = vmatpush1.msra.mxu0 0.0
    %1049 = vmatprep.subr.mxu0 0.0
    %1050 = vmatpush1.msra.mxu0 0.0
    %1051 = vmatprep.subr.mxu0 0.0
    %1052 = vmatpush1.msra.mxu0 0.0
    %1053 = vmatprep.subr.mxu0 0.0
    %1054 = vmatpush1.msra.mxu0 0.0
    %1055 = vmatprep.subr.mxu0 0.0
    %1056 = vmatpush1.msra.mxu0 0.0
    %1057 = vmatprep.subr.mxu0 0.0
    %1058 = vmatpush1.msra.mxu0 0.0
    %1059 = vmatprep.subr.mxu0 0.0
    %1060 = vmatpush1.msra.mxu0 0.0
    %1061 = vmatprep.subr.mxu0 0.0
    %1062 = vmatpush1.msra.mxu0 0.0
    %1063 = vmatprep.subr.mxu0 0.0
    %1064 = vmatpush1.msra.mxu0 0.0
    %1065 = vmatprep.subr.mxu0 0.0
    %1066 = vmatpush1.msra.mxu0 0.0
    %1067 = vmatprep.subr.mxu0 0.0
    %1068 = vmatpush1.msra.mxu0 0.0
    %1069 = vmatprep.subr.mxu0 0.0
    %1070 = vmatpush1.msra.mxu0 0.0
    %1071 = vmatprep.subr.mxu0 0.0
    %1072 = vmatpush1.msra.mxu0 0.0
    %1073 = vmatprep.subr.mxu0 0.0
    %1074 = vmatpush1.msra.mxu0 0.0
    %1075 = vmatprep.subr.mxu0 0.0
    %1076 = vmatpush1.msra.mxu0 0.0
    %1077 = vmatprep.subr.mxu0 0.0
    %1078 = vmatpush1.msra.mxu0 0.0
    %1079 = vmatprep.subr.mxu0 0.0
    %1080 = vmatpush1.msra.mxu0 0.0
    %1081 = vmatprep.subr.mxu0 0.0
    %1082 = vmatpush1.msra.mxu0 0.0
    %1083 = vmatprep.subr.mxu0 0.0
    %1084 = vmatpush1.msra.mxu0 0.0
    %1085 = vmatprep.subr.mxu0 0.0
    %1086 = vmatpush1.msra.mxu0 0.0
    %1087 = vmatprep.subr.mxu0 0.0
    %1088 = vmatpush1.msra.mxu0 0.0
    %1089 = vmatprep.subr.mxu0 0.0
    %1090 = vmatpush1.msra.mxu0 0.0
    %1091 = vmatprep.mubr.f32.mxu0 0.0
    %v1092 = vand.u32 %v642, 4294901760
    %1093 = vmatmul.mubr.f32.gmra.mrb[0].mxu0 %v1092
    %v1094 = vpop.f32.mrb[0].mxu0
    %v1095 = vadd.f32 %v1002, %v1094
    %v1096 = vpop.f32.mrb[0].mxu0
    %1097 = vmatprep.mubr.f32.mxu0 0.0
    %v1098 = vand.u32 %v645, 4294901760
    %1099 = vmatmul.mubr.f32.gmra.mrb[0].mxu0 %v1098
    %v1100 = vpop.f32.mrb[0].mxu0
    %v1101 = vadd.f32 %v1010, %v1100
    %v1102 = vpop.f32.mrb[0].mxu0
    %1103 = vmatprep.mubr.f32.mxu0 0.0
    %v1104 = vand.u32 %v648, 4294901760
    %1105 = vmatmul.mubr.f32.gmra.mrb[0].mxu0 %v1104
    %v1106 = vpop.f32.mrb[0].mxu0
    %v1107 = vadd.f32 %v1018, %v1106
    %v1108 = vpop.f32.mrb[0].mxu0
    %1109 = vdwg.mxu0
    %1110 = vmatprep.subr.mxu0 0.0
    %v1111 = vand.u32 %v638, 4294901760
    %1112 = vmatpush1.msra.mxu0 %v1111
    %1113 = vmatprep.subr.mxu0 0.0
    %v1114 = vand.u32 %v639, 4294901760
    %1115 = vmatpush1.msra.mxu0 %v1114
    %1116 = vmatprep.subr.mxu0 0.0
    %1117 = vmatpush1.msra.mxu0 0.0
    %1118 = vmatprep.subr.mxu0 0.0
    %1119 = vmatpush1.msra.mxu0 0.0
    %1120 = vmatprep.subr.mxu0 0.0
    %1121 = vmatpush1.msra.mxu0 0.0
    %1122 = vmatprep.subr.mxu0 0.0
    %1123 = vmatpush1.msra.mxu0 0.0
    %1124 = vmatprep.subr.mxu0 0.0
    %1125 = vmatpush1.msra.mxu0 0.0
    %1126 = vmatprep.subr.mxu0 0.0
    %1127 = vmatpush1.msra.mxu0 0.0
    %1128 = vmatprep.subr.mxu0 0.0
    %1129 = vmatpush1.msra.mxu0 0.0
    %1130 = vmatprep.subr.mxu0 0.0
    %1131 = vmatpush1.msra.mxu0 0.0
    %1132 = vmatprep.subr.mxu0 0.0
    %1133 = vmatpush1.msra.mxu0 0.0
    %1134 = vmatprep.subr.mxu0 0.0
    %1135 = vmatpush1.msra.mxu0 0.0
    %1136 = vmatprep.subr.mxu0 0.0
    %1137 = vmatpush1.msra.mxu0 0.0
    %1138 = vmatprep.subr.mxu0 0.0
    %1139 = vmatpush1.msra.mxu0 0.0
    %1140 = vmatprep.subr.mxu0 0.0
    %1141 = vmatpush1.msra.mxu0 0.0
    %1142 = vmatprep.subr.mxu0 0.0
    %1143 = vmatpush1.msra.mxu0 0.0
    %1144 = vmatprep.subr.mxu0 0.0
    %1145 = vmatpush1.msra.mxu0 0.0
    %1146 = vmatprep.subr.mxu0 0.0
    %1147 = vmatpush1.msra.mxu0 0.0
    %1148 = vmatprep.subr.mxu0 0.0
    %1149 = vmatpush1.msra.mxu0 0.0
    %1150 = vmatprep.subr.mxu0 0.0
    %1151 = vmatpush1.msra.mxu0 0.0
    %1152 = vmatprep.subr.mxu0 0.0
    %1153 = vmatpush1.msra.mxu0 0.0
    %1154 = vmatprep.subr.mxu0 0.0
    %1155 = vmatpush1.msra.mxu0 0.0
    %1156 = vmatprep.subr.mxu0 0.0
    %1157 = vmatpush1.msra.mxu0 0.0
    %1158 = vmatprep.subr.mxu0 0.0
    %1159 = vmatpush1.msra.mxu0 0.0
    %1160 = vmatprep.subr.mxu0 0.0
    %1161 = vmatpush1.msra.mxu0 0.0
    %1162 = vmatprep.subr.mxu0 0.0
    %1163 = vmatpush1.msra.mxu0 0.0
    %1164 = vmatprep.subr.mxu0 0.0
    %1165 = vmatpush1.msra.mxu0 0.0
    %1166 = vmatprep.subr.mxu0 0.0
    %1167 = vmatpush1.msra.mxu0 0.0
    %1168 = vmatprep.subr.mxu0 0.0
    %1169 = vmatpush1.msra.mxu0 0.0
    %1170 = vmatprep.subr.mxu0 0.0
    %1171 = vmatpush1.msra.mxu0 0.0
    %1172 = vmatprep.subr.mxu0 0.0
    %1173 = vmatpush1.msra.mxu0 0.0
    %1174 = vmatprep.subr.mxu0 0.0
    %1175 = vmatpush1.msra.mxu0 0.0
    %1176 = vmatprep.mubr.f32.mxu0 0.0
    %v1177 = vand.u32 %v642, 4294901760
    %1178 = vmatmul.mubr.f32.gmra.mrb[0].mxu0 %v1177
    %v1179 = vpop.f32.mrb[0].mxu0
    %v1180 = vadd.f32 %v1095, %v1179
    %v1181 = vpop.f32.mrb[0].mxu0
    %1182 = vmatprep.mubr.f32.mxu0 0.0
    %v1183 = vand.u32 %v645, 4294901760
    %1184 = vmatmul.mubr.f32.gmra.mrb[0].mxu0 %v1183
    %v1185 = vpop.f32.mrb[0].mxu0
    %v1186 = vadd.f32 %v1101, %v1185
    %v1187 = vpop.f32.mrb[0].mxu0
    %1188 = vmatprep.mubr.f32.mxu0 0.0
    %v1189 = vand.u32 %v648, 4294901760
    %1190 = vmatmul.mubr.f32.gmra.mrb[0].mxu0 %v1189
    %v1191 = vpop.f32.mrb[0].mxu0
    %v1192 = vadd.f32 %v1107, %v1191
    %v1193 = vpop.f32.mrb[0].mxu0
    %1194 = vdwg.mxu0
    %v1195 = vld [vmem:[%s6] sm:$0xff]
    %v1196 = vld [vmem:[%s6 + $0x8] sm:$0xff]
    %v1197 = vld [vmem:[%s6 + $0x10] sm:$0xff]
    %1199 = vset.pattern.permute.xlu0 0
    %1200 = vperm.xlu0 %1199, %v1195
    %v1201 = vpop.permute.xlu0 %1200
    %1204 = vset.pattern.permute.xlu0 0
    %1205 = vperm.xlu0 %1204, %v1196
    %v1206 = vpop.permute.xlu0 %1205
    %1209 = vset.pattern.permute.xlu0 0
    %1210 = vperm.xlu0 %1209, %v1197
    %v1211 = vpop.permute.xlu0 %1210
    %v1213 = vmul.f32 %v1201, %v575
    %v1214 = vmul.f32 %v1206, %v575
    %v1215 = vmul.f32 %v1211, %v575
    %v1216 = vadd.f32 %v1213, 1.0
    %v1217 = vadd.f32 %v1214, 1.0
    %v1218 = vadd.f32 %v1215, 1.0
    %1219 = vset.pattern.permute.xlu0 1
    %1220 = vperm.xlu0 %1219, %v1195
    %v1221 = vpop.permute.xlu0 %1220
    %1223 = vset.pattern.permute.xlu0 1
    %1224 = vperm.xlu0 %1223, %v1196
    %v1225 = vpop.permute.xlu0 %1224
    %1227 = vset.pattern.permute.xlu0 1
    %1228 = vperm.xlu0 %1227, %v1197
    %v1229 = vpop.permute.xlu0 %1228
    %v1231 = vmul.f32 %v1221, %v591
    %v1232 = vmul.f32 %v1225, %v591
    %v1233 = vmul.f32 %v1229, %v591
    %v1234 = vadd.f32 %v1216, %v1231
    %v1235 = vadd.f32 %v1217, %v1232
    %v1236 = vadd.f32 %v1218, %v1233
    %1237 = vset.pattern.permute.xlu0 2
    %1238 = vperm.xlu0 %1237, %v1195
    %v1239 = vpop.permute.xlu0 %1238
    %1241 = vset.pattern.permute.xlu0 2
    %1242 = vperm.xlu0 %1241, %v1196
    %v1243 = vpop.permute.xlu0 %1242
    %1245 = vset.pattern.permute.xlu0 2
    %1246 = vperm.xlu0 %1245, %v1197
    %v1247 = vpop.permute.xlu0 %1246
    %v1249 = vmul.f32 %v1239, %v607
    %v1250 = vmul.f32 %v1243, %v607
    %v1251 = vmul.f32 %v1247, %v607
    %v1252 = vadd.f32 %v1234, %v1249
    %v1253 = vadd.f32 %v1235, %v1250
    %v1254 = vadd.f32 %v1236, %v1251
    %1255 = vset.pattern.permute.xlu0 3
    %1256 = vperm.xlu0 %1255, %v1195
    %v1257 = vpop.permute.xlu0 %1256
    %1259 = vset.pattern.permute.xlu0 3
    %1260 = vperm.xlu0 %1259, %v1196
    %v1261 = vpop.permute.xlu0 %1260
    %1263 = vset.pattern.permute.xlu0 3
    %1264 = vperm.xlu0 %1263, %v1197
    %v1265 = vpop.permute.xlu0 %1264
    %v1267 = vmul.f32 %v1257, %v623
    %v1268 = vmul.f32 %v1261, %v623
    %v1269 = vmul.f32 %v1265, %v623
    %v1270 = vadd.f32 %v1252, %v1267
    %v1271 = vadd.f32 %v1253, %v1268
    %v1272 = vadd.f32 %v1254, %v1269
    %v1273 = vmul.f32 %v1180, %v1270
    %v1274 = vmul.f32 %v1186, %v1271
    %v1275 = vmul.f32 %v1192, %v1272
    %1276 = vst [vmem:[#allocation4] sm:$0xff] %v1273
    %1277 = vst [vmem:[#allocation4 + $0x8] sm:$0xff] %v1274
    %1278 = vst [vmem:[#allocation4 + $0x10] sm:$0xff] %v1275
    // Predicated region
    $region30: #{tpu_custom_call.1} parent=1 // pred_check
      _
    $region31: #{tpu_custom_call.1} parent=1 // pred_check_branch
      %1280 = sbr.rel (0) target = $region33
    $region32: #{tpu_custom_call.1} parent=1 // pred_region
      %s1282 = ssub.s32 256, 256
      %1283 = vsyncadd [#allocation3], %s1282
      %s1284 = sshll.u32 [#allocation2], 4
      %s1285 = int_to_ptr.vmem [resolvable:$true] %s1284
      %1290 = dma.vmem_to_hbm [thread:$0]  %s1285, 256, %s7, [#allocation3], 128, 128, 8
    $region33: #{tpu_custom_call.1} parent=1 // pred_fallthru
      _
    // Predicated region
    $region34: #{tpu_custom_call.1} parent=1 // pred_check
      _
    $region35: #{tpu_custom_call.1} parent=1 // pred_check_branch
      %1292 = sbr.rel (0) target = $region37
    $region36: #{tpu_custom_call.1} parent=1 // pred_region
      %s1294 = ssub.s32 384, 384
      %1295 = vsyncadd [#allocation5], %s1294
      %s1296 = sshll.u32 [#allocation4], 4
      %s1297 = int_to_ptr.vmem [resolvable:$true] %s1296
      %1302 = dma.vmem_to_hbm [thread:$0]  %s1297, 384, %s8, [#allocation5], 128, 128, 8
    $region37: #{tpu_custom_call.1} parent=1 // pred_fallthru
      _
    // Predicated region
    $region38: #{tpu_custom_call.1} parent=1 // pred_check
      _
    $region39: #{tpu_custom_call.1} parent=1 // pred_check_branch
      %1304 = sbr.rel (0) target = $region41
    $region40: #{tpu_custom_call.1} parent=1 // pred_region
      %1305 = dma.done [#allocation3], 256
    $region41: #{tpu_custom_call.1} parent=1 // pred_fallthru
      _
    // Predicated region
    $region42: #{tpu_custom_call.1} parent=1 // pred_check
      _
    $region43: #{tpu_custom_call.1} parent=1 // pred_check_branch
      %1307 = sbr.rel (0) target = $region45
    $region44: #{tpu_custom_call.1} parent=1 // pred_region
      %1308 = dma.done [#allocation5], 384
    $region45: #{tpu_custom_call.1} parent=1 // pred_fallthru
      _
    %1309 = vsyncpa [#allocation3], 1
    %1310 = vsyncpa [#allocation5], 1

</llo_original>
